<compile_context>
chip_gen: v7x
topology: tpu7x:2x2x1
jax: 0.10.0
libtpu: 0.0.40
codegen_flags: <defaults>
</compile_context>

<pallas_src>
import math

import jax
import jax.numpy as jnp
from jax.experimental import pallas as pl
from jax.experimental.pallas import tpu as pltpu

_BN_EPS = 1e-5
_LANE = 128


def _round_up(x, m):
    return ((x + m - 1) // m) * m


# ----------------------------------------------------------------------------
# Fully fused GIN kernel: all GNN layers + readouts in one pass.
#   For each layer:  h = relu( MLP_foldedBN( (A + (1+eps_l) I) @ h ) )
#                    readout_l = sum_N h
# ----------------------------------------------------------------------------
def make_gin_fused_kernel(n_gnn_layers, n_mlp, raw_feat_dim):
    n_wb = n_gnn_layers * n_mlp

    def kernel(*refs):
        adj_ref, feat_ref, eps_ref = refs[0], refs[1], refs[2]
        wb_refs = refs[3:3 + 2 * n_wb]
        ro_refs = refs[3 + 2 * n_wb:3 + 2 * n_wb + n_gnn_layers]

        G, N, _ = adj_ref.shape
        F = raw_feat_dim

        adj = adj_ref[...]                                  # (G, N, N) bf16
        # Raw, unpadded features (first MLP weight keeps its true input dim F,
        # so no in-kernel lane padding and no padded-K waste is needed).
        h = feat_ref[...].astype(jnp.float32)               # (G, N, F)

        for layer in range(n_gnn_layers):
            D = h.shape[-1]
            scale = 1.0 + eps_ref[layer]                    # SMEM scalar

            # (A + (1+eps) I) @ X == A @ X + (1+eps) * X    (no eye materialized)
            agg = jnp.einsum(
                "gij,gjf->gif",
                adj,
                h.astype(jnp.bfloat16),
                preferred_element_type=jnp.float32,
            )
            x = (agg + scale * h).reshape(G * N, D)          # dense M = G*N rows

            # MLP (BatchNorms pre-folded into W/b on the host):
            #   hidden sublayers: Linear -> ReLU ; last sublayer: plain Linear.
            for l in range(n_mlp):
                w_ref = wb_refs[2 * (layer * n_mlp + l)]
                b_ref = wb_refs[2 * (layer * n_mlp + l) + 1]
                x = (
                    jnp.dot(
                        x.astype(jnp.bfloat16),
                        w_ref[...],
                        preferred_element_type=jnp.float32,
                    )
                    + b_ref[...]
                )
                if l < n_mlp - 1:
                    x = jnp.maximum(x, 0.0)

            # Outer BN (folded for hidden layers, absent for the last layer per
            # the spec) is followed by ReLU in all cases.
            x = jnp.maximum(x, 0.0)
            h = x.reshape(G, N, -1)                          # (G, N, Hp)

            # Fused per-graph readout: the (G, N, Hp) activations never hit HBM.
            ro_refs[layer][...] = jnp.sum(h, axis=1, keepdims=True)

    return kernel


def _pick_graphs_per_block(B, N, F, n_gnn, Hp, weights_bytes, force_g=None):
    """MXU- and VMEM-aware choice of graphs per grid step."""
    per_graph = (
        2 * N * N * 2            # adjacency block, bf16, double-buffered
        + 2 * N * F * 4          # raw feature block, f32, double-buffered
        + 2 * n_gnn * Hp * 4     # readout blocks, double-buffered
        + 8 * N * Hp * 4         # generous headroom for live in-kernel intermediates
    )
    budget = (40 << 20) - 2 * weights_bytes   # stay well inside v7x's 64 MiB VMEM
    if force_g is not None:
        G = force_g
    else:
        divisors = [d for d in range(1, B + 1) if B % d == 0]
        feasible = [d for d in divisors if d * per_graph <= budget] or [1]
        # Prefer the smallest G giving an MXU-filling M = G*N >= 256 while keeping
        # >= 2 "parallel" grid steps (both v7x TensorCores get work); otherwise
        # take the largest feasible G (max matmul M, min per-step overhead on
        # single-TC v5e/v6e and for tiny B).
        good = [d for d in feasible if d * N >= 256 and B // d >= 2]
        G = min(good) if good else max(feasible)
    vmem_needed = 2 * weights_bytes + G * per_graph + (4 << 20)
    vmem_limit = int(min(max(vmem_needed, 32 << 20), 56 << 20))
    return G, vmem_limit


def gin_fused_pallas(adj_bf16, feat_raw, eps, layers, graphs_per_block, vmem_limit):
    """One fused pallas_call covering every GNN layer.

    adj_bf16: (B, N, N) bf16, feat_raw: (B, N, F) f32 (unpadded)
    layers[i] = {"ws": [...], "bs": [...]} padded & BN-folded (bf16 W / f32 b)
    Returns a tuple of n_layers readouts, each (B, 1, Hp) f32.
    """
    B, N, _ = adj_bf16.shape
    F = feat_raw.shape[-1]
    n_gnn = len(layers)
    n_mlp = len(layers[0]["ws"])
    Hp = layers[-1]["ws"][-1].shape[1]

    G = graphs_per_block
    assert B % G == 0, (B, G)
    grid = (B // G,)

    inputs = [adj_bf16, feat_raw, eps.astype(jnp.float32)]
    in_specs = [
        pl.BlockSpec((G, N, N), lambda b: (b, 0, 0)),
        pl.BlockSpec((G, N, F), lambda b: (b, 0, 0)),       # raw feats, last dim = full extent
        pl.BlockSpec(memory_space=pltpu.MemorySpace.SMEM),   # eps vector in SMEM
    ]
    for lp in layers:
        for W, bvec in zip(lp["ws"], lp["bs"]):
            inputs.append(W)
            in_specs.append(pl.BlockSpec(W.shape, lambda b: (0, 0)))
            inputs.append(bvec)
            in_specs.append(pl.BlockSpec(bvec.shape, lambda b: (0, 0)))
    # NOTE: weights are tiny at Hp=128 (double-buffering them is fine); for
    # hidden_dim >= 512 they could be single-buffered / DMA'd once to scratch.

    out_shape = tuple(
        jax.ShapeDtypeStruct((B, 1, Hp), jnp.float32) for _ in range(n_gnn)
    )
    out_specs = tuple(
        pl.BlockSpec((G, 1, Hp), lambda b: (b, 0, 0)) for _ in range(n_gnn)
    )

    # Advisory cost estimate for the XLA scheduler.
    flops = 0
    for lp in layers:
        d_in0 = int(lp["ws"][0].shape[0])
        flops += 2 * B * N * N * d_in0                       # aggregation
        for W in lp["ws"]:
            flops += 2 * B * N * int(W.shape[0]) * int(W.shape[1])
    bytes_accessed = (
        B * N * N * 2            # bf16 adjacency (read once)
        + B * N * F * 4          # raw f32 features
        + n_gnn * B * Hp * 4     # readouts out
        + sum(int(W.size) * 2 + int(bvec.size) * 4
              for lp in layers for W, bvec in zip(lp["ws"], lp["bs"]))
    )
    cost = pl.CostEstimate(flops=int(flops), transcendentals=0,
                           bytes_accessed=int(bytes_accessed))

    return pl.pallas_call(
        make_gin_fused_kernel(n_gnn, n_mlp, F),
        grid=grid,
        in_specs=in_specs,
        out_specs=out_specs,
        out_shape=out_shape,
        compiler_params=pltpu.CompilerParams(
            dimension_semantics=("parallel",),
            vmem_limit_bytes=vmem_limit,
        ),
        cost_estimate=cost,
    )(*inputs)


# ----------------------------------------------------------------------------
# Parameter init (deterministic, mimics nn.Linear default uniform init)
# ----------------------------------------------------------------------------
def _linear_init(key, in_dim, out_dim):
    k1, k2 = jax.random.split(key)
    bound = 1.0 / math.sqrt(in_dim)
    # stored already transposed as (in, out) so the kernel does x @ W
    W = jax.random.uniform(k1, (in_dim, out_dim), jnp.float32, -bound, bound)
    b = jax.random.uniform(k2, (1, out_dim), jnp.float32, -bound, bound)
    return W, b


def _bn_init(dim):
    return (
        jnp.ones((1, dim), jnp.float32),   # gamma
        jnp.zeros((1, dim), jnp.float32),  # beta
        jnp.zeros((1, dim), jnp.float32),  # running mean
        jnp.ones((1, dim), jnp.float32),   # running var
    )


def init_gin_params(key, n_gnn_layers, n_mlp_layers, input_dim, hidden_dim,
                    output_dim):
    params = {
        "eps": jnp.zeros((n_gnn_layers,), jnp.float32),  # nn.Parameter(zeros)
        "mlps": [],
        "outer_bns": [],
    }
    for layer in range(n_gnn_layers):
        layer_in = input_dim if layer == 0 else hidden_dim
        ws, bs, bns = [], [], []
        for l in range(n_mlp_layers):
            d_in = layer_in if l == 0 else hidden_dim
            key, sub = jax.random.split(key)
            W, b = _linear_init(sub, d_in, hidden_dim)
            ws.append(W)
            bs.append(b)
            if l < n_mlp_layers - 1:
                bns.append(_bn_init(hidden_dim))
        params["mlps"].append({"ws": ws, "bs": bs, "bns": bns})
        if layer < n_gnn_layers - 1:
            params["outer_bns"].append(_bn_init(hidden_dim))
    key, sub = jax.random.split(key)
    Wp, bp = _linear_init(sub, input_dim + n_gnn_layers * hidden_dim, output_dim)
    params["pred_w"] = Wp
    params["pred_b"] = bp
    return params


# ----------------------------------------------------------------------------
# Host-side preparation: fold inference BatchNorms into the Linears,
# zero-pad dims to the 128-lane width (except the first layer's true input
# dim, which stays raw so unpadded features can be fed), cast weights to bf16.
# ----------------------------------------------------------------------------
def prepare_gin_params(params):
    n_gnn_layers = len(params["mlps"])
    hidden_dim = params["mlps"][0]["ws"][-1].shape[1]

    prepared_layers = []
    for layer in range(n_gnn_layers):
        mlp = params["mlps"][layer]
        outer_bn = params["outer_bns"][layer] if layer < n_gnn_layers - 1 else None
        n_mlp = len(mlp["ws"])
        ws_p, bs_p = [], []
        for l in range(n_mlp):
            W, b = mlp["ws"][l], mlp["bs"][l]
            bn = mlp["bns"][l] if l < n_mlp - 1 else outer_bn
            if bn is not None:
                g, beta, mu, var = bn
                s = g * jax.lax.rsqrt(var + _BN_EPS)      # (1, d_out)
                W = W * s
                b = (b - mu) * s + beta
            d_in, d_out = W.shape
            # First sublayer of the first GNN layer keeps its true input dim:
            # the kernel feeds it the raw unpadded features directly.
            d_in_p = d_in if (layer == 0 and l == 0) else _round_up(d_in, _LANE)
            d_out_p = _round_up(d_out, _LANE)
            Wp = jnp.zeros((d_in_p, d_out_p), jnp.float32).at[:d_in, :d_out].set(W)
            bp = jnp.zeros((1, d_out_p), jnp.float32).at[:, :d_out].set(b)
            ws_p.append(Wp.astype(jnp.bfloat16))
            bs_p.append(bp)
        prepared_layers.append({"ws": ws_p, "bs": bs_p})

    return {
        "layers": prepared_layers,
        "eps": params["eps"],
        "pred_w": params["pred_w"],
        "pred_b": params["pred_b"],
        "hidden_dim": hidden_dim,
    }


# ----------------------------------------------------------------------------
# Full GIN forward
# ----------------------------------------------------------------------------
def gin_forward(prepared, batch_graphs, batch_features, learn_eps=True,
                graphs_per_block=None):
    B, N, F = batch_features.shape
    H = prepared["hidden_dim"]
    layers = prepared["layers"]
    n_gnn = len(layers)
    Hp = layers[-1]["ws"][-1].shape[1]

    adj_bf16 = batch_graphs.astype(jnp.bfloat16)   # 0/1 exact in bf16
    feat_raw = batch_features.astype(jnp.float32)  # raw, unpadded (padded K not needed)

    eps = prepared["eps"] if learn_eps else jnp.zeros_like(prepared["eps"])

    weights_bytes = sum(int(W.size) * 2 + int(bvec.size) * 4
                        for lp in layers for W, bvec in zip(lp["ws"], lp["bs"]))
    G, vmem_limit = _pick_graphs_per_block(B, N, F, n_gnn, Hp, weights_bytes,
                                           force_g=graphs_per_block)

    readouts = gin_fused_pallas(adj_bf16, feat_raw, eps, layers, G, vmem_limit)

    layer_scores = [jnp.sum(batch_features, axis=1)]           # (B, F)
    for ro in readouts:
        layer_scores.append(ro.reshape(B, -1)[:, :H])          # (B, H)
    graph_readouts = jnp.concatenate(layer_scores, axis=1)
    # Final prediction Linear is microscopic -> plain jnp (XLA fuses it).
    graph_scores = graph_readouts @ prepared["pred_w"] + prepared["pred_b"]
    # dropout=0.0 -> identity
    return 0, graph_scores


# ----------------------------------------------------------------------------
# Pure-JAX reference (same folded/padded weights, f32 math) for a sanity check.
# ----------------------------------------------------------------------------
def gin_reference(prepared, batch_graphs, batch_features, learn_eps=True):
    B, N, F = batch_features.shape
    H = prepared["hidden_dim"]
    eps = prepared["eps"] if learn_eps else jnp.zeros_like(prepared["eps"])
    adj = batch_graphs.astype(jnp.float32)
    h = batch_features.astype(jnp.float32)
    layer_scores = [h.sum(axis=1)]
    for layer, lp in enumerate(prepared["layers"]):
        scale = 1.0 + eps[layer]
        x = jnp.einsum("bij,bjf->bif", adj, h) + scale * h
        x = x.reshape(B * N, -1)
        n_mlp = len(lp["ws"])
        for l in range(n_mlp):
            x = x @ lp["ws"][l].astype(jnp.float32) + lp["bs"][l]
            if l < n_mlp - 1:
                x = jnp.maximum(x, 0.0)
        x = jnp.maximum(x, 0.0)
        h = x.reshape(B, N, -1)
        layer_scores.append(h.sum(axis=1)[:, :H])
    graph_readouts = jnp.concatenate(layer_scores, axis=1)
    return graph_readouts @ prepared["pred_w"] + prepared["pred_b"]


if __name__ == "__main__":
    key = jax.random.PRNGKey(0)

    B, N = 2, 16
    n_gnn_layers, n_mlp_layers = 3, 2
    input_dim, hidden_dim, output_dim = 8, 32, 4

    k_adj, k_feat, k_params = jax.random.split(key, 3)
    adj = (jax.random.uniform(k_adj, (B, N, N)) > 0.5).astype(jnp.float32)
    adj = jnp.maximum(adj, jnp.transpose(adj, (0, 2, 1)))  # symmetric adjacency
    feats = jax.random.normal(k_feat, (B, N, input_dim), jnp.float32)

    params = init_gin_params(
        k_params, n_gnn_layers, n_mlp_layers, input_dim, hidden_dim, output_dim
    )
    prepared = prepare_gin_params(params)

    _, scores = gin_forward(prepared, adj, feats)
    scores = jax.block_until_ready(scores)

    assert scores.shape == (B, output_dim), scores.shape
    assert bool(jnp.all(jnp.isfinite(scores)))

    ref_scores = gin_reference(prepared, adj, feats)
    assert bool(jnp.allclose(scores, ref_scores, rtol=5e-2, atol=1e-1)), (
        scores, ref_scores)

    print("KERNEL_OK")
</pallas_src>

<mosaic_0001>
module attributes {stable_mosaic.version = 11 : i64} {
  func.func @kernel(%arg0: i32, %arg1: memref<2x16x16xbf16, #tpu.memory_space<vmem>>, %arg2: memref<2x16x8xf32, #tpu.memory_space<vmem>>, %arg3: memref<3xf32, #tpu.memory_space<smem>>, %arg4: memref<8x128xbf16, #tpu.memory_space<vmem>>, %arg5: memref<1x128xf32, #tpu.memory_space<vmem>>, %arg6: memref<128x128xbf16, #tpu.memory_space<vmem>>, %arg7: memref<1x128xf32, #tpu.memory_space<vmem>>, %arg8: memref<128x128xbf16, #tpu.memory_space<vmem>>, %arg9: memref<1x128xf32, #tpu.memory_space<vmem>>, %arg10: memref<128x128xbf16, #tpu.memory_space<vmem>>, %arg11: memref<1x128xf32, #tpu.memory_space<vmem>>, %arg12: memref<128x128xbf16, #tpu.memory_space<vmem>>, %arg13: memref<1x128xf32, #tpu.memory_space<vmem>>, %arg14: memref<128x128xbf16, #tpu.memory_space<vmem>>, %arg15: memref<1x128xf32, #tpu.memory_space<vmem>>, %arg16: memref<2x1x128xf32, #tpu.memory_space<vmem>>, %arg17: memref<2x1x128xf32, #tpu.memory_space<vmem>>, %arg18: memref<2x1x128xf32, #tpu.memory_space<vmem>>) attributes {dimension_semantics = [#tpu.dimension_semantics<parallel>], iteration_bounds = array<i64: 1>, scalar_prefetch = 0 : i64, scratch_operands = 0 : i64, tpu.core_type = #tpu.core_type<tc>, window_params = [{transform_indices = @transform_0, window_bounds = array<i64: 2, 16, 16>}, {transform_indices = @transform_1, window_bounds = array<i64: 2, 16, 8>}, {transform_indices = @transform_2, window_bounds = array<i64: 3>}, {pipeline_mode = #tpu.pipeline_mode<synchronous>, transform_indices = @transform_3, window_bounds = array<i64: 8, 128>}, {pipeline_mode = #tpu.pipeline_mode<synchronous>, transform_indices = @transform_4, window_bounds = array<i64: 1, 128>}, {pipeline_mode = #tpu.pipeline_mode<synchronous>, transform_indices = @transform_5, window_bounds = array<i64: 128, 128>}, {pipeline_mode = #tpu.pipeline_mode<synchronous>, transform_indices = @transform_6, window_bounds = array<i64: 1, 128>}, {pipeline_mode = #tpu.pipeline_mode<synchronous>, transform_indices = @transform_7, window_bounds = array<i64: 128, 128>}, {pipeline_mode = #tpu.pipeline_mode<synchronous>, transform_indices = @transform_8, window_bounds = array<i64: 1, 128>}, {pipeline_mode = #tpu.pipeline_mode<synchronous>, transform_indices = @transform_9, window_bounds = array<i64: 128, 128>}, {pipeline_mode = #tpu.pipeline_mode<synchronous>, transform_indices = @transform_10, window_bounds = array<i64: 1, 128>}, {pipeline_mode = #tpu.pipeline_mode<synchronous>, transform_indices = @transform_11, window_bounds = array<i64: 128, 128>}, {pipeline_mode = #tpu.pipeline_mode<synchronous>, transform_indices = @transform_12, window_bounds = array<i64: 1, 128>}, {pipeline_mode = #tpu.pipeline_mode<synchronous>, transform_indices = @transform_13, window_bounds = array<i64: 128, 128>}, {pipeline_mode = #tpu.pipeline_mode<synchronous>, transform_indices = @transform_14, window_bounds = array<i64: 1, 128>}, {transform_indices = @transform_15, window_bounds = array<i64: 2, 1, 128>}, {transform_indices = @transform_16, window_bounds = array<i64: 2, 1, 128>}, {transform_indices = @transform_17, window_bounds = array<i64: 2, 1, 128>}]} {
    %c0 = arith.constant 0 : index
    %c0_0 = arith.constant 0 : index
    %c0_1 = arith.constant 0 : index
    %0 = vector.load %arg1[%c0, %c0_0, %c0_1] : memref<2x16x16xbf16, #tpu.memory_space<vmem>>, vector<2x16x16xbf16>
    %c0_2 = arith.constant 0 : index
    %c0_3 = arith.constant 0 : index
    %c0_4 = arith.constant 0 : index
    %1 = vector.load %arg2[%c0_2, %c0_3, %c0_4] : memref<2x16x8xf32, #tpu.memory_space<vmem>>, vector<2x16x8xf32>
    %c0_5 = arith.constant 0 : index
    %2 = memref.load %arg3[%c0_5] : memref<3xf32, #tpu.memory_space<smem>>
    %cst = arith.constant 1.000000e+00 : f32
    %3 = arith.addf %cst, %2 : f32
    %4 = arith.truncf %1 : vector<2x16x8xf32> to vector<2x16x8xbf16>
    "tpu.trace_start"() <{level = 10 : i32, message = "gij,gjf->gif"}> : () -> ()
    %cst_6 = arith.constant dense<0.000000e+00> : vector<2x16x8xf32>
    %5 = tpu.matmul %0, %4, %cst_6 {dimension_numbers = #tpu.dot_dimension_numbers<[2], [1], [1], [2], [0, 0, 0, 1, 1, 2], [0], [0]>} : vector<2x16x16xbf16>, vector<2x16x8xbf16>, vector<2x16x8xf32> -> vector<2x16x8xf32>
    "tpu.trace_stop"() : () -> ()
    %6 = vector.broadcast %3 : f32 to vector<2x16x8xf32>
    %7 = arith.mulf %6, %1 : vector<2x16x8xf32>
    %8 = arith.addf %5, %7 : vector<2x16x8xf32>
    %9 = vector.shape_cast %8 : vector<2x16x8xf32> to vector<32x8xf32>
    %10 = arith.truncf %9 : vector<32x8xf32> to vector<32x8xbf16>
    %c0_7 = arith.constant 0 : index
    %c0_8 = arith.constant 0 : index
    %11 = vector.load %arg4[%c0_7, %c0_8] : memref<8x128xbf16, #tpu.memory_space<vmem>>, vector<8x128xbf16>
    %cst_9 = arith.constant dense<0.000000e+00> : vector<32x128xf32>
    %12 = tpu.matmul %10, %11, %cst_9 {dimension_numbers = #tpu.dot_dimension_numbers<[1], [0], [0], [1], [0, 0, 1, 1], [], []>} : vector<32x8xbf16>, vector<8x128xbf16>, vector<32x128xf32> -> vector<32x128xf32>
    %c0_10 = arith.constant 0 : index
    %c0_11 = arith.constant 0 : index
    %13 = vector.load %arg5[%c0_10, %c0_11] : memref<1x128xf32, #tpu.memory_space<vmem>>, vector<1x128xf32>
    %14 = vector.broadcast %13 : vector<1x128xf32> to vector<32x128xf32>
    %15 = arith.addf %12, %14 : vector<32x128xf32>
    %cst_12 = arith.constant 0.000000e+00 : f32
    %16 = vector.broadcast %cst_12 : f32 to vector<32x128xf32>
    %17 = arith.maximumf %15, %16 : vector<32x128xf32>
    %18 = arith.truncf %17 : vector<32x128xf32> to vector<32x128xbf16>
    %c0_13 = arith.constant 0 : index
    %c0_14 = arith.constant 0 : index
    %19 = vector.load %arg6[%c0_13, %c0_14] : memref<128x128xbf16, #tpu.memory_space<vmem>>, vector<128x128xbf16>
    %cst_15 = arith.constant dense<0.000000e+00> : vector<32x128xf32>
    %20 = tpu.matmul %18, %19, %cst_15 {dimension_numbers = #tpu.dot_dimension_numbers<[1], [0], [0], [1], [0, 0, 1, 1], [], []>} : vector<32x128xbf16>, vector<128x128xbf16>, vector<32x128xf32> -> vector<32x128xf32>
    %c0_16 = arith.constant 0 : index
    %c0_17 = arith.constant 0 : index
    %21 = vector.load %arg7[%c0_16, %c0_17] : memref<1x128xf32, #tpu.memory_space<vmem>>, vector<1x128xf32>
    %22 = vector.broadcast %21 : vector<1x128xf32> to vector<32x128xf32>
    %23 = arith.addf %20, %22 : vector<32x128xf32>
    %cst_18 = arith.constant 0.000000e+00 : f32
    %24 = vector.broadcast %cst_18 : f32 to vector<32x128xf32>
    %25 = arith.maximumf %23, %24 : vector<32x128xf32>
    %26 = vector.shape_cast %25 : vector<32x128xf32> to vector<2x16x128xf32>
    %cst_19 = arith.constant dense<0.000000e+00> : vector<2x128xf32>
    %27 = vector.multi_reduction <add>, %26, %cst_19 [1] : vector<2x16x128xf32> to vector<2x128xf32>
    %28 = vector.shape_cast %27 : vector<2x128xf32> to vector<2x1x128xf32>
    %c0_20 = arith.constant 0 : index
    %c0_21 = arith.constant 0 : index
    %c0_22 = arith.constant 0 : index
    %29 = vector.load %arg16[%c0_20, %c0_21, %c0_22] : memref<2x1x128xf32, #tpu.memory_space<vmem>>, vector<2x1x128xf32>
    tpu.vector_store %arg16[%c0_20, %c0_21, %c0_22], %28 {strides = array<i32>} : memref<2x1x128xf32, #tpu.memory_space<vmem>>, vector<2x1x128xf32>,
    %c1 = arith.constant 1 : index
    %30 = memref.load %arg3[%c1] : memref<3xf32, #tpu.memory_space<smem>>
    %cst_23 = arith.constant 1.000000e+00 : f32
    %31 = arith.addf %cst_23, %30 : f32
    %32 = arith.truncf %26 : vector<2x16x128xf32> to vector<2x16x128xbf16>
    "tpu.trace_start"() <{level = 10 : i32, message = "gij,gjf->gif"}> : () -> ()
    %cst_24 = arith.constant dense<0.000000e+00> : vector<2x16x128xf32>
    %33 = tpu.matmul %0, %32, %cst_24 {dimension_numbers = #tpu.dot_dimension_numbers<[2], [1], [1], [2], [0, 0, 0, 1, 1, 2], [0], [0]>} : vector<2x16x16xbf16>, vector<2x16x128xbf16>, vector<2x16x128xf32> -> vector<2x16x128xf32>
    "tpu.trace_stop"() : () -> ()
    %34 = vector.broadcast %31 : f32 to vector<2x16x128xf32>
    %35 = arith.mulf %34, %26 : vector<2x16x128xf32>
    %36 = arith.addf %33, %35 : vector<2x16x128xf32>
    %37 = vector.shape_cast %36 : vector<2x16x128xf32> to vector<32x128xf32>
    %38 = arith.truncf %37 : vector<32x128xf32> to vector<32x128xbf16>
    %c0_25 = arith.constant 0 : index
    %c0_26 = arith.constant 0 : index
    %39 = vector.load %arg8[%c0_25, %c0_26] : memref<128x128xbf16, #tpu.memory_space<vmem>>, vector<128x128xbf16>
    %cst_27 = arith.constant dense<0.000000e+00> : vector<32x128xf32>
    %40 = tpu.matmul %38, %39, %cst_27 {dimension_numbers = #tpu.dot_dimension_numbers<[1], [0], [0], [1], [0, 0, 1, 1], [], []>} : vector<32x128xbf16>, vector<128x128xbf16>, vector<32x128xf32> -> vector<32x128xf32>
    %c0_28 = arith.constant 0 : index
    %c0_29 = arith.constant 0 : index
    %41 = vector.load %arg9[%c0_28, %c0_29] : memref<1x128xf32, #tpu.memory_space<vmem>>, vector<1x128xf32>
    %42 = vector.broadcast %41 : vector<1x128xf32> to vector<32x128xf32>
    %43 = arith.addf %40, %42 : vector<32x128xf32>
    %cst_30 = arith.constant 0.000000e+00 : f32
    %44 = vector.broadcast %cst_30 : f32 to vector<32x128xf32>
    %45 = arith.maximumf %43, %44 : vector<32x128xf32>
    %46 = arith.truncf %45 : vector<32x128xf32> to vector<32x128xbf16>
    %c0_31 = arith.constant 0 : index
    %c0_32 = arith.constant 0 : index
    %47 = vector.load %arg10[%c0_31, %c0_32] : memref<128x128xbf16, #tpu.memory_space<vmem>>, vector<128x128xbf16>
    %cst_33 = arith.constant dense<0.000000e+00> : vector<32x128xf32>
    %48 = tpu.matmul %46, %47, %cst_33 {dimension_numbers = #tpu.dot_dimension_numbers<[1], [0], [0], [1], [0, 0, 1, 1], [], []>} : vector<32x128xbf16>, vector<128x128xbf16>, vector<32x128xf32> -> vector<32x128xf32>
    %c0_34 = arith.constant 0 : index
    %c0_35 = arith.constant 0 : index
    %49 = vector.load %arg11[%c0_34, %c0_35] : memref<1x128xf32, #tpu.memory_space<vmem>>, vector<1x128xf32>
    %50 = vector.broadcast %49 : vector<1x128xf32> to vector<32x128xf32>
    %51 = arith.addf %48, %50 : vector<32x128xf32>
    %cst_36 = arith.constant 0.000000e+00 : f32
    %52 = vector.broadcast %cst_36 : f32 to vector<32x128xf32>
    %53 = arith.maximumf %51, %52 : vector<32x128xf32>
    %54 = vector.shape_cast %53 : vector<32x128xf32> to vector<2x16x128xf32>
    %cst_37 = arith.constant dense<0.000000e+00> : vector<2x128xf32>
    %55 = vector.multi_reduction <add>, %54, %cst_37 [1] : vector<2x16x128xf32> to vector<2x128xf32>
    %56 = vector.shape_cast %55 : vector<2x128xf32> to vector<2x1x128xf32>
    %c0_38 = arith.constant 0 : index
    %c0_39 = arith.constant 0 : index
    %c0_40 = arith.constant 0 : index
    %57 = vector.load %arg17[%c0_38, %c0_39, %c0_40] : memref<2x1x128xf32, #tpu.memory_space<vmem>>, vector<2x1x128xf32>
    tpu.vector_store %arg17[%c0_38, %c0_39, %c0_40], %56 {strides = array<i32>} : memref<2x1x128xf32, #tpu.memory_space<vmem>>, vector<2x1x128xf32>,
    %c2 = arith.constant 2 : index
    %58 = memref.load %arg3[%c2] : memref<3xf32, #tpu.memory_space<smem>>
    %cst_41 = arith.constant 1.000000e+00 : f32
    %59 = arith.addf %cst_41, %58 : f32
    %60 = arith.truncf %54 : vector<2x16x128xf32> to vector<2x16x128xbf16>
    "tpu.trace_start"() <{level = 10 : i32, message = "gij,gjf->gif"}> : () -> ()
    %cst_42 = arith.constant dense<0.000000e+00> : vector<2x16x128xf32>
    %61 = tpu.matmul %0, %60, %cst_42 {dimension_numbers = #tpu.dot_dimension_numbers<[2], [1], [1], [2], [0, 0, 0, 1, 1, 2], [0], [0]>} : vector<2x16x16xbf16>, vector<2x16x128xbf16>, vector<2x16x128xf32> -> vector<2x16x128xf32>
    "tpu.trace_stop"() : () -> ()
    %62 = vector.broadcast %59 : f32 to vector<2x16x128xf32>
    %63 = arith.mulf %62, %54 : vector<2x16x128xf32>
    %64 = arith.addf %61, %63 : vector<2x16x128xf32>
    %65 = vector.shape_cast %64 : vector<2x16x128xf32> to vector<32x128xf32>
    %66 = arith.truncf %65 : vector<32x128xf32> to vector<32x128xbf16>
    %c0_43 = arith.constant 0 : index
    %c0_44 = arith.constant 0 : index
    %67 = vector.load %arg12[%c0_43, %c0_44] : memref<128x128xbf16, #tpu.memory_space<vmem>>, vector<128x128xbf16>
    %cst_45 = arith.constant dense<0.000000e+00> : vector<32x128xf32>
    %68 = tpu.matmul %66, %67, %cst_45 {dimension_numbers = #tpu.dot_dimension_numbers<[1], [0], [0], [1], [0, 0, 1, 1], [], []>} : vector<32x128xbf16>, vector<128x128xbf16>, vector<32x128xf32> -> vector<32x128xf32>
    %c0_46 = arith.constant 0 : index
    %c0_47 = arith.constant 0 : index
    %69 = vector.load %arg13[%c0_46, %c0_47] : memref<1x128xf32, #tpu.memory_space<vmem>>, vector<1x128xf32>
    %70 = vector.broadcast %69 : vector<1x128xf32> to vector<32x128xf32>
    %71 = arith.addf %68, %70 : vector<32x128xf32>
    %cst_48 = arith.constant 0.000000e+00 : f32
    %72 = vector.broadcast %cst_48 : f32 to vector<32x128xf32>
    %73 = arith.maximumf %71, %72 : vector<32x128xf32>
    %74 = arith.truncf %73 : vector<32x128xf32> to vector<32x128xbf16>
    %c0_49 = arith.constant 0 : index
    %c0_50 = arith.constant 0 : index
    %75 = vector.load %arg14[%c0_49, %c0_50] : memref<128x128xbf16, #tpu.memory_space<vmem>>, vector<128x128xbf16>
    %cst_51 = arith.constant dense<0.000000e+00> : vector<32x128xf32>
    %76 = tpu.matmul %74, %75, %cst_51 {dimension_numbers = #tpu.dot_dimension_numbers<[1], [0], [0], [1], [0, 0, 1, 1], [], []>} : vector<32x128xbf16>, vector<128x128xbf16>, vector<32x128xf32> -> vector<32x128xf32>
    %c0_52 = arith.constant 0 : index
    %c0_53 = arith.constant 0 : index
    %77 = vector.load %arg15[%c0_52, %c0_53] : memref<1x128xf32, #tpu.memory_space<vmem>>, vector<1x128xf32>
    %78 = vector.broadcast %77 : vector<1x128xf32> to vector<32x128xf32>
    %79 = arith.addf %76, %78 : vector<32x128xf32>
    %cst_54 = arith.constant 0.000000e+00 : f32
    %80 = vector.broadcast %cst_54 : f32 to vector<32x128xf32>
    %81 = arith.maximumf %79, %80 : vector<32x128xf32>
    %82 = vector.shape_cast %81 : vector<32x128xf32> to vector<2x16x128xf32>
    %cst_55 = arith.constant dense<0.000000e+00> : vector<2x128xf32>
    %83 = vector.multi_reduction <add>, %82, %cst_55 [1] : vector<2x16x128xf32> to vector<2x128xf32>
    %84 = vector.shape_cast %83 : vector<2x128xf32> to vector<2x1x128xf32>
    %c0_56 = arith.constant 0 : index
    %c0_57 = arith.constant 0 : index
    %c0_58 = arith.constant 0 : index
    %85 = vector.load %arg18[%c0_56, %c0_57, %c0_58] : memref<2x1x128xf32, #tpu.memory_space<vmem>>, vector<2x1x128xf32>
    tpu.vector_store %arg18[%c0_56, %c0_57, %c0_58], %84 {strides = array<i32>} : memref<2x1x128xf32, #tpu.memory_space<vmem>>, vector<2x1x128xf32>,
    return
  }
  func.func @transform_0(%arg0: i32) -> (i32, i32, i32) {
    %c0_i32 = arith.constant 0 : i32
    %c0_i32_0 = arith.constant 0 : i32
    %c0_i32_1 = arith.constant 0 : i32
    return %arg0, %c0_i32, %c0_i32_0 : i32, i32, i32
  }
  func.func @transform_1(%arg0: i32) -> (i32, i32, i32) {
    %c0_i32 = arith.constant 0 : i32
    %c0_i32_0 = arith.constant 0 : i32
    %c0_i32_1 = arith.constant 0 : i32
    return %arg0, %c0_i32, %c0_i32_0 : i32, i32, i32
  }
  func.func @transform_2(%arg0: i32) -> i32 {
    %c0_i32 = arith.constant 0 : i32
    %c0_i32_0 = arith.constant 0 : i32
    return %c0_i32 : i32
  }
  func.func @transform_3(%arg0: i32) -> (i32, i32) {
    %c0_i32 = arith.constant 0 : i32
    %c0_i32_0 = arith.constant 0 : i32
    %c0_i32_1 = arith.constant 0 : i32
    return %c0_i32, %c0_i32_0 : i32, i32
  }
  func.func @transform_4(%arg0: i32) -> (i32, i32) {
    %c0_i32 = arith.constant 0 : i32
    %c0_i32_0 = arith.constant 0 : i32
    %c0_i32_1 = arith.constant 0 : i32
    return %c0_i32, %c0_i32_0 : i32, i32
  }
  func.func @transform_5(%arg0: i32) -> (i32, i32) {
    %c0_i32 = arith.constant 0 : i32
    %c0_i32_0 = arith.constant 0 : i32
    %c0_i32_1 = arith.constant 0 : i32
    return %c0_i32, %c0_i32_0 : i32, i32
  }
  func.func @transform_6(%arg0: i32) -> (i32, i32) {
    %c0_i32 = arith.constant 0 : i32
    %c0_i32_0 = arith.constant 0 : i32
    %c0_i32_1 = arith.constant 0 : i32
    return %c0_i32, %c0_i32_0 : i32, i32
  }
  func.func @transform_7(%arg0: i32) -> (i32, i32) {
    %c0_i32 = arith.constant 0 : i32
    %c0_i32_0 = arith.constant 0 : i32
    %c0_i32_1 = arith.constant 0 : i32
    return %c0_i32, %c0_i32_0 : i32, i32
  }
  func.func @transform_8(%arg0: i32) -> (i32, i32) {
    %c0_i32 = arith.constant 0 : i32
    %c0_i32_0 = arith.constant 0 : i32
    %c0_i32_1 = arith.constant 0 : i32
    return %c0_i32, %c0_i32_0 : i32, i32
  }
  func.func @transform_9(%arg0: i32) -> (i32, i32) {
    %c0_i32 = arith.constant 0 : i32
    %c0_i32_0 = arith.constant 0 : i32
    %c0_i32_1 = arith.constant 0 : i32
    return %c0_i32, %c0_i32_0 : i32, i32
  }
  func.func @transform_10(%arg0: i32) -> (i32, i32) {
    %c0_i32 = arith.constant 0 : i32
    %c0_i32_0 = arith.constant 0 : i32
    %c0_i32_1 = arith.constant 0 : i32
    return %c0_i32, %c0_i32_0 : i32, i32
  }
  func.func @transform_11(%arg0: i32) -> (i32, i32) {
    %c0_i32 = arith.constant 0 : i32
    %c0_i32_0 = arith.constant 0 : i32
    %c0_i32_1 = arith.constant 0 : i32
    return %c0_i32, %c0_i32_0 : i32, i32
  }
  func.func @transform_12(%arg0: i32) -> (i32, i32) {
    %c0_i32 = arith.constant 0 : i32
    %c0_i32_0 = arith.constant 0 : i32
    %c0_i32_1 = arith.constant 0 : i32
    return %c0_i32, %c0_i32_0 : i32, i32
  }
  func.func @transform_13(%arg0: i32) -> (i32, i32) {
    %c0_i32 = arith.constant 0 : i32
    %c0_i32_0 = arith.constant 0 : i32
    %c0_i32_1 = arith.constant 0 : i32
    return %c0_i32, %c0_i32_0 : i32, i32
  }
  func.func @transform_14(%arg0: i32) -> (i32, i32) {
    %c0_i32 = arith.constant 0 : i32
    %c0_i32_0 = arith.constant 0 : i32
    %c0_i32_1 = arith.constant 0 : i32
    return %c0_i32, %c0_i32_0 : i32, i32
  }
  func.func @transform_15(%arg0: i32) -> (i32, i32, i32) {
    %c0_i32 = arith.constant 0 : i32
    %c0_i32_0 = arith.constant 0 : i32
    %c0_i32_1 = arith.constant 0 : i32
    return %arg0, %c0_i32, %c0_i32_0 : i32, i32, i32
  }
  func.func @transform_16(%arg0: i32) -> (i32, i32, i32) {
    %c0_i32 = arith.constant 0 : i32
    %c0_i32_0 = arith.constant 0 : i32
    %c0_i32_1 = arith.constant 0 : i32
    return %arg0, %c0_i32, %c0_i32_0 : i32, i32, i32
  }
  func.func @transform_17(%arg0: i32) -> (i32, i32, i32) {
    %c0_i32 = arith.constant 0 : i32
    %c0_i32_0 = arith.constant 0 : i32
    %c0_i32_1 = arith.constant 0 : i32
    return %arg0, %c0_i32, %c0_i32_0 : i32, i32, i32
  }
}

</mosaic_0001>

<llo_original>
// kernel: tpu_custom_call.1
$region0: #{tpu_custom_call.1}
  #allocation0 [shape = 'u32[]', space=smem, size = 0x4, offset = 0x4, fixed_abs, tag = 'smem constant byte address 0x4 - core index']
  #allocation1 [shape = 'u32[144,128]{1,0:T(1,128)}', space=vmem, size = 0x12000, scoped, tag = 'internal scratch']
  %s0 = inlined_call_operand.hbm [shape: bf16[2,16,16], index: 0, kind: input, shape index: {}]
  %s1 = inlined_call_operand.vmem [shape: f32[2,16,8], index: 1, kind: input, shape index: {}]
  %s2 = inlined_call_operand.vmem [shape: f32[3], index: 2, kind: input, shape index: {}]
  %s3 = inlined_call_operand.hbm [shape: bf16[8,128], index: 3, kind: input, shape index: {}]
  %s4 = inlined_call_operand.vmem [shape: f32[1,128], index: 4, kind: input, shape index: {}]
  %s5 = inlined_call_operand.vmem [shape: bf16[128,128], index: 5, kind: input, shape index: {}]
  %s6 = inlined_call_operand.vmem [shape: f32[1,128], index: 6, kind: input, shape index: {}]
  %s7 = inlined_call_operand.hbm [shape: bf16[128,128], index: 7, kind: input, shape index: {}]
  %s8 = inlined_call_operand.vmem [shape: f32[1,128], index: 8, kind: input, shape index: {}]
  %s9 = inlined_call_operand.hbm [shape: bf16[128,128], index: 9, kind: input, shape index: {}]
  %s10 = inlined_call_operand.vmem [shape: f32[1,128], index: 10, kind: input, shape index: {}]
  %s11 = inlined_call_operand.hbm [shape: bf16[128,128], index: 11, kind: input, shape index: {}]
  %s12 = inlined_call_operand.vmem [shape: f32[1,128], index: 12, kind: input, shape index: {}]
  %s13 = inlined_call_operand.hbm [shape: bf16[128,128], index: 13, kind: input, shape index: {}]
  %s14 = inlined_call_operand.vmem [shape: f32[1,128], index: 14, kind: input, shape index: {}]
  %s15 = inlined_call_operand.hbm [shape: f32[2,1,128], index: 15, kind: output, shape index: {0}]
  %s16 = inlined_call_operand.hbm [shape: f32[2,1,128], index: 16, kind: output, shape index: {1}]
  %s17 = inlined_call_operand.hbm [shape: f32[2,1,128], index: 17, kind: output, shape index: {2}]
  %18 = xla_tuple %s15, %s16, %s17
  %s19 = sld [smem:[#allocation0]]
  $region114: #{tpu_custom_call.1} parent=0
    _
  %s21 = ssub.s32 1, %s19
  %s22 = scalar_select 0, %s21, %s19
  $region1: #{tpu_custom_call.1} parent=0
    #allocation2 [shape = 'u8[8192]{0}', space=vmem, size = 0x2000, scoped, tag = 'input window, operand 0, single buffered']
    #allocation3 [shape = 's32[1]{0}', space=sflag, size = 0x4, scoped, tag = 'scoped memory for tpu_custom_call.1']
    #allocation4 [shape = 's32[1]{0}', space=sflag, size = 0x4, scoped, tag = 'scoped memory for tpu_custom_call.1']
    #allocation5 [shape = 's32[1]{0}', space=sflag, size = 0x4, scoped, tag = 'scoped memory for tpu_custom_call.1']
    #allocation6 [shape = 'u8[512]{0}', space=smem, size = 0x200, scoped, tag = 'input window, operand 2, single buffered']
    #allocation7 [shape = 'u8[2048]{0}', space=vmem, size = 0x800, scoped, tag = 'input window, operand 3, single buffered']
    #allocation8 [shape = 's32[1]{0}', space=sflag, size = 0x4, scoped, tag = 'scoped memory for tpu_custom_call.1']
    #allocation9 [shape = 'u8[32768]{0}', space=vmem, size = 0x8000, scoped, tag = 'input window, operand 7, single buffered']
    #allocation10 [shape = 'u8[32768]{0}', space=vmem, size = 0x8000, scoped, tag = 'input window, operand 9, single buffered']
    #allocation11 [shape = 's32[1]{0}', space=sflag, size = 0x4, scoped, tag = 'scoped memory for tpu_custom_call.1']
    #allocation12 [shape = 'u8[32768]{0}', space=vmem, size = 0x8000, scoped, tag = 'input window, operand 11, single buffered']
    #allocation13 [shape = 'u8[32768]{0}', space=vmem, size = 0x8000, scoped, tag = 'input window, operand 13, single buffered']
    #allocation14 [shape = 's32[1]{0}', space=sflag, size = 0x4, scoped, tag = 'scoped memory for tpu_custom_call.1']
    #allocation15 [shape = 'u8[1024]{0}', space=vmem, size = 0x400, scoped, tag = 'output window, operand 0, single buffered']
    #allocation16 [shape = 'u8[1024]{0}', space=vmem, size = 0x400, scoped, tag = 'output window, operand 1, single buffered']
    #allocation17 [shape = 's32[1]{0}', space=sflag, size = 0x4, scoped, tag = 'scoped memory for tpu_custom_call.1']
    #allocation18 [shape = 'u8[1024]{0}', space=vmem, size = 0x400, scoped, tag = 'output window, operand 2, single buffered']
    %23 = vsyncpa [#allocation3], 0
    %24 = vsyncpa [#allocation5], 0
    %25 = vsyncpa [#allocation8], 0
    %26 = vsyncpa [#allocation11], 0
    %27 = vsyncpa [#allocation14], 0
    %28 = vsyncpa [#allocation4], 0
    %29 = vsyncpa [#allocation17], 0
    // Predicated region
    $region2: #{tpu_custom_call.1} parent=1 // pred_check
      _
    $region3: #{tpu_custom_call.1} parent=1 // pred_check_branch
      %31 = sbr.rel (0) target = $region5
    $region4: #{tpu_custom_call.1} parent=1 // pred_region
      %s33 = ssub.s32 256, 256
      %34 = vsyncadd [#allocation3], %s33
      %s35 = sshll.u32 [#allocation2], 4
      %s36 = int_to_ptr.vmem [resolvable:$true] %s35
      %41 = dma.hbm_to_vmem [thread:$0]  %s0, 256, %s36, [#allocation3], 64, 64, 4
    $region5: #{tpu_custom_call.1} parent=1 // pred_fallthru
      _
    // Predicated region
    $region6: #{tpu_custom_call.1} parent=1 // pred_check
      _
    $region7: #{tpu_custom_call.1} parent=1 // pred_check_branch
      %43 = sbr.rel (0) target = $region9
    $region8: #{tpu_custom_call.1} parent=1 // pred_region
      _
    $region9: #{tpu_custom_call.1} parent=1 // pred_fallthru
      _
    // Predicated region
    $region10: #{tpu_custom_call.1} parent=1 // pred_check
      _
    $region11: #{tpu_custom_call.1} parent=1 // pred_check_branch
      %45 = sbr.rel (0) target = $region13
    $region12: #{tpu_custom_call.1} parent=1 // pred_region
      %s47 = ssub.s32 16, 16
      %48 = vsyncadd [#allocation5], %s47
      %s50 = sshll.u32 %s2, 4
      %s51 = int_to_ptr.vmem [resolvable:$true] %s50
      %53 = dma.vmem_to_smem %s51, 16, [#allocation6], [#allocation5]
    $region13: #{tpu_custom_call.1} parent=1 // pred_fallthru
      _
    // Predicated region
    $region14: #{tpu_custom_call.1} parent=1 // pred_check
      _
    $region15: #{tpu_custom_call.1} parent=1 // pred_check_branch
      %55 = sbr.rel (0) target = $region17
    $region16: #{tpu_custom_call.1} parent=1 // pred_region
      %s57 = ssub.s32 64, 64
      %58 = vsyncadd [#allocation8], %s57
      %s60 = sshll.u32 [#allocation7], 4
      %s61 = int_to_ptr.vmem [resolvable:$true] %s60
      %63 = dma.hbm_to_vmem [thread:$0]  %s3, 64, %s61, [#allocation8]
    $region17: #{tpu_custom_call.1} parent=1 // pred_fallthru
      _
    // Predicated region
    $region18: #{tpu_custom_call.1} parent=1 // pred_check
      _
    $region19: #{tpu_custom_call.1} parent=1 // pred_check_branch
      %65 = sbr.rel (0) target = $region21
    $region20: #{tpu_custom_call.1} parent=1 // pred_region
      _
    $region21: #{tpu_custom_call.1} parent=1 // pred_fallthru
      _
    // Predicated region
    $region22: #{tpu_custom_call.1} parent=1 // pred_check
      _
    $region23: #{tpu_custom_call.1} parent=1 // pred_check_branch
      %67 = sbr.rel (0) target = $region25
    $region24: #{tpu_custom_call.1} parent=1 // pred_region
      _
    $region25: #{tpu_custom_call.1} parent=1 // pred_fallthru
      _
    // Predicated region
    $region26: #{tpu_custom_call.1} parent=1 // pred_check
      _
    $region27: #{tpu_custom_call.1} parent=1 // pred_check_branch
      %69 = sbr.rel (0) target = $region29
    $region28: #{tpu_custom_call.1} parent=1 // pred_region
      _
    $region29: #{tpu_custom_call.1} parent=1 // pred_fallthru
      _
    // Predicated region
    $region30: #{tpu_custom_call.1} parent=1 // pred_check
      _
    $region31: #{tpu_custom_call.1} parent=1 // pred_check_branch
      %71 = sbr.rel (0) target = $region33
    $region32: #{tpu_custom_call.1} parent=1 // pred_region
      %s73 = ssub.s32 1024, 1024
      %74 = vsyncadd [#allocation8], %s73
      %s75 = sshll.u32 [#allocation9], 4
      %s76 = int_to_ptr.vmem [resolvable:$true] %s75
      %81 = dma.hbm_to_vmem [thread:$0]  %s7, 1024, %s76, [#allocation8], 64, 64, 4
    $region33: #{tpu_custom_call.1} parent=1 // pred_fallthru
      _
    // Predicated region
    $region34: #{tpu_custom_call.1} parent=1 // pred_check
      _
    $region35: #{tpu_custom_call.1} parent=1 // pred_check_branch
      %83 = sbr.rel (0) target = $region37
    $region36: #{tpu_custom_call.1} parent=1 // pred_region
      _
    $region37: #{tpu_custom_call.1} parent=1 // pred_fallthru
      _
    // Predicated region
    $region38: #{tpu_custom_call.1} parent=1 // pred_check
      _
    $region39: #{tpu_custom_call.1} parent=1 // pred_check_branch
      %85 = sbr.rel (0) target = $region41
    $region40: #{tpu_custom_call.1} parent=1 // pred_region
      %s87 = ssub.s32 1024, 1024
      %88 = vsyncadd [#allocation11], %s87
      %s89 = sshll.u32 [#allocation10], 4
      %s90 = int_to_ptr.vmem [resolvable:$true] %s89
      %95 = dma.hbm_to_vmem [thread:$0]  %s9, 1024, %s90, [#allocation11], 64, 64, 4
    $region41: #{tpu_custom_call.1} parent=1 // pred_fallthru
      _
    // Predicated region
    $region42: #{tpu_custom_call.1} parent=1 // pred_check
      _
    $region43: #{tpu_custom_call.1} parent=1 // pred_check_branch
      %97 = sbr.rel (0) target = $region45
    $region44: #{tpu_custom_call.1} parent=1 // pred_region
      _
    $region45: #{tpu_custom_call.1} parent=1 // pred_fallthru
      _
    // Predicated region
    $region46: #{tpu_custom_call.1} parent=1 // pred_check
      _
    $region47: #{tpu_custom_call.1} parent=1 // pred_check_branch
      %99 = sbr.rel (0) target = $region49
    $region48: #{tpu_custom_call.1} parent=1 // pred_region
      %s101 = ssub.s32 1024, 1024
      %102 = vsyncadd [#allocation11], %s101
      %s103 = sshll.u32 [#allocation12], 4
      %s104 = int_to_ptr.vmem [resolvable:$true] %s103
      %109 = dma.hbm_to_vmem [thread:$0]  %s11, 1024, %s104, [#allocation11], 64, 64, 4
    $region49: #{tpu_custom_call.1} parent=1 // pred_fallthru
      _
    // Predicated region
    $region50: #{tpu_custom_call.1} parent=1 // pred_check
      _
    $region51: #{tpu_custom_call.1} parent=1 // pred_check_branch
      %111 = sbr.rel (0) target = $region53
    $region52: #{tpu_custom_call.1} parent=1 // pred_region
      _
    $region53: #{tpu_custom_call.1} parent=1 // pred_fallthru
      _
    // Predicated region
    $region54: #{tpu_custom_call.1} parent=1 // pred_check
      _
    $region55: #{tpu_custom_call.1} parent=1 // pred_check_branch
      %113 = sbr.rel (0) target = $region57
    $region56: #{tpu_custom_call.1} parent=1 // pred_region
      %s115 = ssub.s32 1024, 1024
      %116 = vsyncadd [#allocation14], %s115
      %s117 = sshll.u32 [#allocation13], 4
      %s118 = int_to_ptr.vmem [resolvable:$true] %s117
      %123 = dma.hbm_to_vmem [thread:$0]  %s13, 1024, %s118, [#allocation14], 64, 64, 4
    $region57: #{tpu_custom_call.1} parent=1 // pred_fallthru
      _
    // Predicated region
    $region58: #{tpu_custom_call.1} parent=1 // pred_check
      _
    $region59: #{tpu_custom_call.1} parent=1 // pred_check_branch
      %125 = sbr.rel (0) target = $region61
    $region60: #{tpu_custom_call.1} parent=1 // pred_region
      _
    $region61: #{tpu_custom_call.1} parent=1 // pred_fallthru
      _
    // Predicated region
    $region62: #{tpu_custom_call.1} parent=1 // pred_check
      _
    $region63: #{tpu_custom_call.1} parent=1 // pred_check_branch
      %127 = sbr.rel (0) target = $region65
    $region64: #{tpu_custom_call.1} parent=1 // pred_region
      %128 = dma.done [#allocation3], 256
    $region65: #{tpu_custom_call.1} parent=1 // pred_fallthru
      _
    // Predicated region
    $region66: #{tpu_custom_call.1} parent=1 // pred_check
      _
    $region67: #{tpu_custom_call.1} parent=1 // pred_check_branch
      %130 = sbr.rel (0) target = $region69
    $region68: #{tpu_custom_call.1} parent=1 // pred_region
      %131 = dma.done [#allocation5], 16
    $region69: #{tpu_custom_call.1} parent=1 // pred_fallthru
      _
    // Predicated region
    $region70: #{tpu_custom_call.1} parent=1 // pred_check
      _
    $region71: #{tpu_custom_call.1} parent=1 // pred_check_branch
      %133 = sbr.rel (0) target = $region73
    $region72: #{tpu_custom_call.1} parent=1 // pred_region
      %134 = dma.done [#allocation8], 64
    $region73: #{tpu_custom_call.1} parent=1 // pred_fallthru
      _
    // Predicated region
    $region74: #{tpu_custom_call.1} parent=1 // pred_check
      _
    $region75: #{tpu_custom_call.1} parent=1 // pred_check_branch
      %136 = sbr.rel (0) target = $region77
    $region76: #{tpu_custom_call.1} parent=1 // pred_region
      %137 = dma.done [#allocation8], 1024
    $region77: #{tpu_custom_call.1} parent=1 // pred_fallthru
      _
    // Predicated region
    $region78: #{tpu_custom_call.1} parent=1 // pred_check
      _
    $region79: #{tpu_custom_call.1} parent=1 // pred_check_branch
      %139 = sbr.rel (0) target = $region81
    $region80: #{tpu_custom_call.1} parent=1 // pred_region
      %140 = dma.done [#allocation11], 1024
    $region81: #{tpu_custom_call.1} parent=1 // pred_fallthru
      _
    // Predicated region
    $region82: #{tpu_custom_call.1} parent=1 // pred_check
      _
    $region83: #{tpu_custom_call.1} parent=1 // pred_check_branch
      %142 = sbr.rel (0) target = $region85
    $region84: #{tpu_custom_call.1} parent=1 // pred_region
      %143 = dma.done [#allocation11], 1024
    $region85: #{tpu_custom_call.1} parent=1 // pred_fallthru
      _
    // Predicated region
    $region86: #{tpu_custom_call.1} parent=1 // pred_check
      _
    $region87: #{tpu_custom_call.1} parent=1 // pred_check_branch
      %145 = sbr.rel (0) target = $region89
    $region88: #{tpu_custom_call.1} parent=1 // pred_region
      %146 = dma.done [#allocation14], 1024
    $region89: #{tpu_custom_call.1} parent=1 // pred_fallthru
      _
    %147 = sfence
    %v149 = vld [vmem:[#allocation2] sm:$0xf]
    %v150 = vld [vmem:[#allocation2 + $0x4] sm:$0xf]
    %v151 = vld [vmem:[#allocation2 + $0x8] sm:$0xf]
    %v152 = vld [vmem:[#allocation2 + $0xc] sm:$0xf]
    %v153 = vld [vmem:[%s1] sm:$0xff]
    %v154 = vld [vmem:[%s1 + $0x8] sm:$0xff]
    %v155 = vld [vmem:[%s1 + $0x10] sm:$0xff]
    %v156 = vld [vmem:[%s1 + $0x18] sm:$0xff]
    %s157 = sld [smem:[#allocation6]]
    %s158 = sadd.f32 %s157, 1.0
    %v159 = vpack.c.bf16 %v154, %v153
    %v160 = vpack.c.bf16 %v156, %v155
    %v161 = vstv %s158
    %v162 = vmul.f32 %v161, %v153
    %v163 = vmul.f32 %v161, %v154
    %v164 = vmul.f32 %v161, %v155
    %v165 = vmul.f32 %v161, %v156
    %v168 = vunpack.c.l.b16 %v149
    %v169 = vunpack.c.l.b16 %v150
    %v170 = vpack.c.b16 %v169, %v168
    %vm171 = vcmask 130048
    %v173 = vsel %vm171, %v170, 0
    %175 = vmatprep.subr.bf16.mxu0 0
    %176 = vmatpush1.bf16.msra.mxu0 %v159
    %177 = vmatprep.subr.bf16.mxu0 0
    %178 = vmatpush1.bf16.msra.mxu0 0
    %179 = vmatprep.subr.bf16.mxu0 0
    %180 = vmatpush1.bf16.msra.mxu0 0
    %181 = vmatprep.subr.bf16.mxu0 0
    %182 = vmatpush1.bf16.msra.mxu0 0
    %183 = vmatprep.subr.bf16.mxu0 0
    %184 = vmatpush1.bf16.msra.mxu0 0
    %185 = vmatprep.subr.bf16.mxu0 0
    %186 = vmatpush1.bf16.msra.mxu0 0
    %187 = vmatprep.subr.bf16.mxu0 0
    %188 = vmatpush1.bf16.msra.mxu0 0
    %189 = vmatprep.subr.bf16.mxu0 0
    %190 = vmatpush1.bf16.msra.mxu0 0
    %191 = vmatprep.subr.bf16.mxu0 0
    %192 = vmatpush1.bf16.msra.mxu0 0
    %193 = vmatprep.subr.bf16.mxu0 0
    %194 = vmatpush1.bf16.msra.mxu0 0
    %195 = vmatprep.subr.bf16.mxu0 0
    %196 = vmatpush1.bf16.msra.mxu0 0
    %197 = vmatprep.subr.bf16.mxu0 0
    %198 = vmatpush1.bf16.msra.mxu0 0
    %199 = vmatprep.subr.bf16.mxu0 0
    %200 = vmatpush1.bf16.msra.mxu0 0
    %201 = vmatprep.subr.bf16.mxu0 0
    %202 = vmatpush1.bf16.msra.mxu0 0
    %203 = vmatprep.subr.bf16.mxu0 0
    %204 = vmatpush1.bf16.msra.mxu0 0
    %205 = vmatprep.subr.bf16.mxu0 0
    %206 = vmatpush1.bf16.msra.mxu0 0
    %207 = vmatprep.mubr.bf16.mxu0 0
    %208 = vmatmul.mubr.bf16.gmra.mrb[0].mxu0 %v173
    %v209 = vpop.f32.mrb[0].mxu0
    %v210 = vadd.f32 %v162, %v209
    %v211 = vpop.f32.mrb[0].mxu0
    %v212 = vpop.f32.mrb[0].mxu0
    %v213 = vadd.f32 %v163, %v212
    %v214 = vpop.f32.mrb[0].mxu0
    %215 = vdwg.mxu0
    %v218 = vunpack.c.l.b16 %v151
    %v219 = vunpack.c.l.b16 %v152
    %v220 = vpack.c.b16 %v219, %v218
    %v222 = vsel %vm171, %v220, 0
    %224 = vmatprep.subr.bf16.mxu0 0
    %225 = vmatpush1.bf16.msra.mxu0 %v160
    %226 = vmatprep.subr.bf16.mxu0 0
    %227 = vmatpush1.bf16.msra.mxu0 0
    %228 = vmatprep.subr.bf16.mxu0 0
    %229 = vmatpush1.bf16.msra.mxu0 0
    %230 = vmatprep.subr.bf16.mxu0 0
    %231 = vmatpush1.bf16.msra.mxu0 0
    %232 = vmatprep.subr.bf16.mxu0 0
    %233 = vmatpush1.bf16.msra.mxu0 0
    %234 = vmatprep.subr.bf16.mxu0 0
    %235 = vmatpush1.bf16.msra.mxu0 0
    %236 = vmatprep.subr.bf16.mxu0 0
    %237 = vmatpush1.bf16.msra.mxu0 0
    %238 = vmatprep.subr.bf16.mxu0 0
    %239 = vmatpush1.bf16.msra.mxu0 0
    %240 = vmatprep.subr.bf16.mxu0 0
    %241 = vmatpush1.bf16.msra.mxu0 0
    %242 = vmatprep.subr.bf16.mxu0 0
    %243 = vmatpush1.bf16.msra.mxu0 0
    %244 = vmatprep.subr.bf16.mxu0 0
    %245 = vmatpush1.bf16.msra.mxu0 0
    %246 = vmatprep.subr.bf16.mxu0 0
    %247 = vmatpush1.bf16.msra.mxu0 0
    %248 = vmatprep.subr.bf16.mxu0 0
    %249 = vmatpush1.bf16.msra.mxu0 0
    %250 = vmatprep.subr.bf16.mxu0 0
    %251 = vmatpush1.bf16.msra.mxu0 0
    %252 = vmatprep.subr.bf16.mxu0 0
    %253 = vmatpush1.bf16.msra.mxu0 0
    %254 = vmatprep.subr.bf16.mxu0 0
    %255 = vmatpush1.bf16.msra.mxu0 0
    %256 = vmatprep.mubr.bf16.mxu0 0
    %257 = vmatmul.mubr.bf16.gmra.mrb[0].mxu0 %v222
    %v258 = vpop.f32.mrb[0].mxu0
    %v259 = vadd.f32 %v164, %v258
    %v260 = vpop.f32.mrb[0].mxu0
    %v261 = vpop.f32.mrb[0].mxu0
    %v262 = vadd.f32 %v165, %v261
    %v263 = vpop.f32.mrb[0].mxu0
    %264 = vdwg.mxu0
    %v265 = vpack.c.bf16 %v213, %v210
    %v266 = vpack.c.bf16 %v262, %v259
    %v267 = vld [vmem:[#allocation7] sm:$0xf]
    %v268 = vld [vmem:[%s4] sm:$0x1]
    %v270 = vlaneseq
    %v271 = vshrl.u32 %v270, 7
    %v272 = vsub.s32 0, %v271
    %v273 = vrot.slane %v268, %v272
    %vm275 = vcmask 64512
    %v277 = vsel %vm275, %v265, 0
    %v280 = vsel %vm275, %v266, 0
    %vm282 = vcmask 1043456
    %v284 = vsel %vm282, %v267, 0
    %286 = vmatprep.subr.bf16.mxu0 0
    %287 = vmatpush1.bf16.msra.mxu0 %v284
    %288 = vmatprep.subr.bf16.mxu0 0
    %289 = vmatpush1.bf16.msra.mxu0 0
    %290 = vmatprep.subr.bf16.mxu0 0
    %291 = vmatpush1.bf16.msra.mxu0 0
    %292 = vmatprep.subr.bf16.mxu0 0
    %293 = vmatpush1.bf16.msra.mxu0 0
    %294 = vmatprep.subr.bf16.mxu0 0
    %295 = vmatpush1.bf16.msra.mxu0 0
    %296 = vmatprep.subr.bf16.mxu0 0
    %297 = vmatpush1.bf16.msra.mxu0 0
    %298 = vmatprep.subr.bf16.mxu0 0
    %299 = vmatpush1.bf16.msra.mxu0 0
    %300 = vmatprep.subr.bf16.mxu0 0
    %301 = vmatpush1.bf16.msra.mxu0 0
    %302 = vmatprep.subr.bf16.mxu0 0
    %303 = vmatpush1.bf16.msra.mxu0 0
    %304 = vmatprep.subr.bf16.mxu0 0
    %305 = vmatpush1.bf16.msra.mxu0 0
    %306 = vmatprep.subr.bf16.mxu0 0
    %307 = vmatpush1.bf16.msra.mxu0 0
    %308 = vmatprep.subr.bf16.mxu0 0
    %309 = vmatpush1.bf16.msra.mxu0 0
    %310 = vmatprep.subr.bf16.mxu0 0
    %311 = vmatpush1.bf16.msra.mxu0 0
    %312 = vmatprep.subr.bf16.mxu0 0
    %313 = vmatpush1.bf16.msra.mxu0 0
    %314 = vmatprep.subr.bf16.mxu0 0
    %315 = vmatpush1.bf16.msra.mxu0 0
    %316 = vmatprep.subr.bf16.mxu0 0
    %317 = vmatpush1.bf16.msra.mxu0 0
    %318 = vmatprep.mubr.bf16.mxu0 0
    %319 = vmatmul.mubr.bf16.gmra.mrb[0].mxu0 %v277
    %v320 = vpop.f32.mrb[0].mxu0
    %v321 = vadd.f32 %v273, %v320
    %v322 = vpop.f32.mrb[0].mxu0
    %v323 = vpop.f32.mrb[0].mxu0
    %v324 = vadd.f32 %v273, %v323
    %v325 = vpop.f32.mrb[0].mxu0
    %326 = vmatprep.mubr.bf16.mxu0 0
    %327 = vmatmul.mubr.bf16.gmra.mrb[0].mxu0 %v280
    %v328 = vpop.f32.mrb[0].mxu0
    %v329 = vadd.f32 %v273, %v328
    %v330 = vpop.f32.mrb[0].mxu0
    %v331 = vpop.f32.mrb[0].mxu0
    %v332 = vadd.f32 %v273, %v331
    %v333 = vpop.f32.mrb[0].mxu0
    %334 = vdwg.mxu0
    %v335 = vmax.f32 %v321, 0.0
    %v336 = vmax.f32 %v324, 0.0
    %v337 = vmax.f32 %v329, 0.0
    %v338 = vmax.f32 %v332, 0.0
    %v339 = vpack.c.bf16 %v336, %v335
    %v340 = vpack.c.bf16 %v338, %v337
    %v341 = vld [vmem:[%s5] sm:$0xf]
    %v342 = vld [vmem:[%s5 + $0x4] sm:$0xf]
    %v343 = vld [vmem:[%s5 + $0x8] sm:$0xf]
    %v344 = vld [vmem:[%s5 + $0xc] sm:$0xf]
    %v345 = vld [vmem:[%s5 + $0x10] sm:$0xf]
    %v346 = vld [vmem:[%s5 + $0x14] sm:$0xf]
    %v347 = vld [vmem:[%s5 + $0x18] sm:$0xf]
    %v348 = vld [vmem:[%s5 + $0x1c] sm:$0xf]
    %v349 = vld [vmem:[%s5 + $0x20] sm:$0xf]
    %v350 = vld [vmem:[%s5 + $0x24] sm:$0xf]
    %v351 = vld [vmem:[%s5 + $0x28] sm:$0xf]
    %v352 = vld [vmem:[%s5 + $0x2c] sm:$0xf]
    %v353 = vld [vmem:[%s5 + $0x30] sm:$0xf]
    %v354 = vld [vmem:[%s5 + $0x34] sm:$0xf]
    %v355 = vld [vmem:[%s5 + $0x38] sm:$0xf]
    %v356 = vld [vmem:[%s5 + $0x3c] sm:$0xf]
    %v357 = vld [vmem:[%s6] sm:$0x1]
    %v359 = vlaneseq
    %v360 = vshrl.u32 %v359, 7
    %v361 = vsub.s32 0, %v360
    %v362 = vrot.slane %v357, %v361
    %v380 = vunpack.c.l.b16 %v341
    %v381 = vunpack.c.l.b16 %v342
    %v382 = vunpack.c.l.b16 %v343
    %v383 = vunpack.c.l.b16 %v344
    %v384 = vunpack.c.l.b16 %v345
    %v385 = vunpack.c.l.b16 %v346
    %v386 = vunpack.c.l.b16 %v347
    %v387 = vunpack.c.l.b16 %v348
    %v388 = vunpack.c.l.b16 %v349
    %v389 = vunpack.c.l.b16 %v350
    %v390 = vunpack.c.l.b16 %v351
    %v391 = vunpack.c.l.b16 %v352
    %v392 = vunpack.c.l.b16 %v353
    %v393 = vunpack.c.l.b16 %v354
    %v394 = vunpack.c.l.b16 %v355
    %v395 = vunpack.c.l.b16 %v356
    %v396 = vpack.c.b16 %v381, %v380
    %v397 = vpack.c.b16 %v383, %v382
    %v398 = vpack.c.b16 %v385, %v384
    %v399 = vpack.c.b16 %v387, %v386
    %v400 = vpack.c.b16 %v389, %v388
    %v401 = vpack.c.b16 %v391, %v390
    %v402 = vpack.c.b16 %v393, %v392
    %v403 = vpack.c.b16 %v395, %v394
    %412 = vmatprep.subr.bf16.mxu0 0
    %413 = vmatpush1.bf16.msra.mxu0 %v396
    %414 = vmatprep.subr.bf16.mxu0 0
    %415 = vmatpush1.bf16.msra.mxu0 %v397
    %416 = vmatprep.subr.bf16.mxu0 0
    %417 = vmatpush1.bf16.msra.mxu0 %v398
    %418 = vmatprep.subr.bf16.mxu0 0
    %419 = vmatpush1.bf16.msra.mxu0 %v399
    %420 = vmatprep.subr.bf16.mxu0 0
    %421 = vmatpush1.bf16.msra.mxu0 %v400
    %422 = vmatprep.subr.bf16.mxu0 0
    %423 = vmatpush1.bf16.msra.mxu0 %v401
    %424 = vmatprep.subr.bf16.mxu0 0
    %425 = vmatpush1.bf16.msra.mxu0 %v402
    %426 = vmatprep.subr.bf16.mxu0 0
    %427 = vmatpush1.bf16.msra.mxu0 %v403
    %428 = vmatprep.subr.bf16.mxu0 0
    %429 = vmatpush1.bf16.msra.mxu0 0
    %430 = vmatprep.subr.bf16.mxu0 0
    %431 = vmatpush1.bf16.msra.mxu0 0
    %432 = vmatprep.subr.bf16.mxu0 0
    %433 = vmatpush1.bf16.msra.mxu0 0
    %434 = vmatprep.subr.bf16.mxu0 0
    %435 = vmatpush1.bf16.msra.mxu0 0
    %436 = vmatprep.subr.bf16.mxu0 0
    %437 = vmatpush1.bf16.msra.mxu0 0
    %438 = vmatprep.subr.bf16.mxu0 0
    %439 = vmatpush1.bf16.msra.mxu0 0
    %440 = vmatprep.subr.bf16.mxu0 0
    %441 = vmatpush1.bf16.msra.mxu0 0
    %442 = vmatprep.subr.bf16.mxu0 0
    %443 = vmatpush1.bf16.msra.mxu0 0
    %444 = vmatprep.mubr.bf16.mxu0 0
    %445 = vmatmul.mubr.bf16.gmra.mrb[0].mxu0 %v339
    %v446 = vpop.f32.mrb[0].mxu0
    %v447 = vadd.f32 %v362, %v446
    %v448 = vpop.f32.mrb[0].mxu0
    %v449 = vpop.f32.mrb[0].mxu0
    %v450 = vadd.f32 %v362, %v449
    %v451 = vpop.f32.mrb[0].mxu0
    %452 = vmatprep.mubr.bf16.mxu0 0
    %453 = vmatmul.mubr.bf16.gmra.mrb[0].mxu0 %v340
    %v454 = vpop.f32.mrb[0].mxu0
    %v455 = vadd.f32 %v362, %v454
    %v456 = vpop.f32.mrb[0].mxu0
    %v457 = vpop.f32.mrb[0].mxu0
    %v458 = vadd.f32 %v362, %v457
    %v459 = vpop.f32.mrb[0].mxu0
    %460 = vdwg.mxu0
    %v461 = vmax.f32 %v447, 0.0
    %v462 = vmax.f32 %v450, 0.0
    %v463 = vmax.f32 %v455, 0.0
    %v464 = vmax.f32 %v458, 0.0
    %v465 = vadd.f32 %v461, %v462
    %v466 = vrot.slane %v465, 4
    %v467 = vadd.f32 %v465, %v466
    %v468 = vrot.slane %v467, 2
    %v469 = vadd.f32 %v467, %v468
    %v470 = vrot.slane %v469, 1
    %v471 = vadd.f32 %v469, %v470
    %v472 = vadd.f32 %v463, %v464
    %v473 = vrot.slane %v472, 4
    %v474 = vadd.f32 %v472, %v473
    %v475 = vrot.slane %v474, 2
    %v476 = vadd.f32 %v474, %v475
    %v477 = vrot.slane %v476, 1
    %v478 = vadd.f32 %v476, %v477
    %479 = vst [vmem:[#allocation15] sm:$0x1] %v471
    %480 = vst [vmem:[#allocation15 + $0x1] sm:$0x1] %v478
    %s481 = sld [smem:[#allocation6 + $0x1]]
    %s482 = sadd.f32 %s481, 1.0
    %v483 = vpack.c.bf16 %v462, %v461
    %v484 = vpack.c.bf16 %v464, %v463
    %v485 = vstv %s482
    %v486 = vmul.f32 %v485, %v461
    %v487 = vmul.f32 %v485, %v462
    %v488 = vmul.f32 %v485, %v463
    %v489 = vmul.f32 %v485, %v464
    %490 = vmatprep.subr.bf16.mxu0 0
    %491 = vmatpush1.bf16.msra.mxu0 %v483
    %492 = vmatprep.subr.bf16.mxu0 0
    %493 = vmatpush1.bf16.msra.mxu0 0
    %494 = vmatprep.subr.bf16.mxu0 0
    %495 = vmatpush1.bf16.msra.mxu0 0
    %496 = vmatprep.subr.bf16.mxu0 0
    %497 = vmatpush1.bf16.msra.mxu0 0
    %498 = vmatprep.subr.bf16.mxu0 0
    %499 = vmatpush1.bf16.msra.mxu0 0
    %500 = vmatprep.subr.bf16.mxu0 0
    %501 = vmatpush1.bf16.msra.mxu0 0
    %502 = vmatprep.subr.bf16.mxu0 0
    %503 = vmatpush1.bf16.msra.mxu0 0
    %504 = vmatprep.subr.bf16.mxu0 0
    %505 = vmatpush1.bf16.msra.mxu0 0
    %506 = vmatprep.subr.bf16.mxu0 0
    %507 = vmatpush1.bf16.msra.mxu0 0
    %508 = vmatprep.subr.bf16.mxu0 0
    %509 = vmatpush1.bf16.msra.mxu0 0
    %510 = vmatprep.subr.bf16.mxu0 0
    %511 = vmatpush1.bf16.msra.mxu0 0
    %512 = vmatprep.subr.bf16.mxu0 0
    %513 = vmatpush1.bf16.msra.mxu0 0
    %514 = vmatprep.subr.bf16.mxu0 0
    %515 = vmatpush1.bf16.msra.mxu0 0
    %516 = vmatprep.subr.bf16.mxu0 0
    %517 = vmatpush1.bf16.msra.mxu0 0
    %518 = vmatprep.subr.bf16.mxu0 0
    %519 = vmatpush1.bf16.msra.mxu0 0
    %520 = vmatprep.subr.bf16.mxu0 0
    %521 = vmatpush1.bf16.msra.mxu0 0
    %522 = vmatprep.mubr.bf16.mxu0 0
    %523 = vmatmul.mubr.bf16.gmra.mrb[0].mxu0 %v173
    %v524 = vpop.f32.mrb[0].mxu0
    %v525 = vadd.f32 %v486, %v524
    %v526 = vpop.f32.mrb[0].mxu0
    %v527 = vpop.f32.mrb[0].mxu0
    %v528 = vadd.f32 %v487, %v527
    %v529 = vpop.f32.mrb[0].mxu0
    %530 = vdwg.mxu0
    %531 = vmatprep.subr.bf16.mxu0 0
    %532 = vmatpush1.bf16.msra.mxu0 %v484
    %533 = vmatprep.subr.bf16.mxu0 0
    %534 = vmatpush1.bf16.msra.mxu0 0
    %535 = vmatprep.subr.bf16.mxu0 0
    %536 = vmatpush1.bf16.msra.mxu0 0
    %537 = vmatprep.subr.bf16.mxu0 0
    %538 = vmatpush1.bf16.msra.mxu0 0
    %539 = vmatprep.subr.bf16.mxu0 0
    %540 = vmatpush1.bf16.msra.mxu0 0
    %541 = vmatprep.subr.bf16.mxu0 0
    %542 = vmatpush1.bf16.msra.mxu0 0
    %543 = vmatprep.subr.bf16.mxu0 0
    %544 = vmatpush1.bf16.msra.mxu0 0
    %545 = vmatprep.subr.bf16.mxu0 0
    %546 = vmatpush1.bf16.msra.mxu0 0
    %547 = vmatprep.subr.bf16.mxu0 0
    %548 = vmatpush1.bf16.msra.mxu0 0
    %549 = vmatprep.subr.bf16.mxu0 0
    %550 = vmatpush1.bf16.msra.mxu0 0
    %551 = vmatprep.subr.bf16.mxu0 0
    %552 = vmatpush1.bf16.msra.mxu0 0
    %553 = vmatprep.subr.bf16.mxu0 0
    %554 = vmatpush1.bf16.msra.mxu0 0
    %555 = vmatprep.subr.bf16.mxu0 0
    %556 = vmatpush1.bf16.msra.mxu0 0
    %557 = vmatprep.subr.bf16.mxu0 0
    %558 = vmatpush1.bf16.msra.mxu0 0
    %559 = vmatprep.subr.bf16.mxu0 0
    %560 = vmatpush1.bf16.msra.mxu0 0
    %561 = vmatprep.subr.bf16.mxu0 0
    %562 = vmatpush1.bf16.msra.mxu0 0
    %563 = vmatprep.mubr.bf16.mxu0 0
    %564 = vmatmul.mubr.bf16.gmra.mrb[0].mxu0 %v222
    %v565 = vpop.f32.mrb[0].mxu0
    %v566 = vadd.f32 %v488, %v565
    %v567 = vpop.f32.mrb[0].mxu0
    %v568 = vpop.f32.mrb[0].mxu0
    %v569 = vadd.f32 %v489, %v568
    %v570 = vpop.f32.mrb[0].mxu0
    %571 = vdwg.mxu0
    %v572 = vpack.c.bf16 %v528, %v525
    %v573 = vpack.c.bf16 %v569, %v566
    %v574 = vld [vmem:[#allocation9] sm:$0xf]
    %v575 = vld [vmem:[#allocation9 + $0x4] sm:$0xf]
    %v576 = vld [vmem:[#allocation9 + $0x8] sm:$0xf]
    %v577 = vld [vmem:[#allocation9 + $0xc] sm:$0xf]
    %v578 = vld [vmem:[#allocation9 + $0x10] sm:$0xf]
    %v579 = vld [vmem:[#allocation9 + $0x14] sm:$0xf]
    %v580 = vld [vmem:[#allocation9 + $0x18] sm:$0xf]
    %v581 = vld [vmem:[#allocation9 + $0x1c] sm:$0xf]
    %v582 = vld [vmem:[#allocation9 + $0x20] sm:$0xf]
    %v583 = vld [vmem:[#allocation9 + $0x24] sm:$0xf]
    %v584 = vld [vmem:[#allocation9 + $0x28] sm:$0xf]
    %v585 = vld [vmem:[#allocation9 + $0x2c] sm:$0xf]
    %v586 = vld [vmem:[#allocation9 + $0x30] sm:$0xf]
    %v587 = vld [vmem:[#allocation9 + $0x34] sm:$0xf]
    %v588 = vld [vmem:[#allocation9 + $0x38] sm:$0xf]
    %v589 = vld [vmem:[#allocation9 + $0x3c] sm:$0xf]
    %v590 = vld [vmem:[%s8] sm:$0x1]
    %v592 = vlaneseq
    %v593 = vshrl.u32 %v592, 7
    %v594 = vsub.s32 0, %v593
    %v595 = vrot.slane %v590, %v594
    %v613 = vunpack.c.l.b16 %v574
    %v614 = vunpack.c.l.b16 %v575
    %v615 = vunpack.c.l.b16 %v576
    %v616 = vunpack.c.l.b16 %v577
    %v617 = vunpack.c.l.b16 %v578
    %v618 = vunpack.c.l.b16 %v579
    %v619 = vunpack.c.l.b16 %v580
    %v620 = vunpack.c.l.b16 %v581
    %v621 = vunpack.c.l.b16 %v582
    %v622 = vunpack.c.l.b16 %v583
    %v623 = vunpack.c.l.b16 %v584
    %v624 = vunpack.c.l.b16 %v585
    %v625 = vunpack.c.l.b16 %v586
    %v626 = vunpack.c.l.b16 %v587
    %v627 = vunpack.c.l.b16 %v588
    %v628 = vunpack.c.l.b16 %v589
    %v629 = vpack.c.b16 %v614, %v613
    %v630 = vpack.c.b16 %v616, %v615
    %v631 = vpack.c.b16 %v618, %v617
    %v632 = vpack.c.b16 %v620, %v619
    %v633 = vpack.c.b16 %v622, %v621
    %v634 = vpack.c.b16 %v624, %v623
    %v635 = vpack.c.b16 %v626, %v625
    %v636 = vpack.c.b16 %v628, %v627
    %645 = vmatprep.subr.bf16.mxu0 0
    %646 = vmatpush1.bf16.msra.mxu0 %v629
    %647 = vmatprep.subr.bf16.mxu0 0
    %648 = vmatpush1.bf16.msra.mxu0 %v630
    %649 = vmatprep.subr.bf16.mxu0 0
    %650 = vmatpush1.bf16.msra.mxu0 %v631
    %651 = vmatprep.subr.bf16.mxu0 0
    %652 = vmatpush1.bf16.msra.mxu0 %v632
    %653 = vmatprep.subr.bf16.mxu0 0
    %654 = vmatpush1.bf16.msra.mxu0 %v633
    %655 = vmatprep.subr.bf16.mxu0 0
    %656 = vmatpush1.bf16.msra.mxu0 %v634
    %657 = vmatprep.subr.bf16.mxu0 0
    %658 = vmatpush1.bf16.msra.mxu0 %v635
    %659 = vmatprep.subr.bf16.mxu0 0
    %660 = vmatpush1.bf16.msra.mxu0 %v636
    %661 = vmatprep.subr.bf16.mxu0 0
    %662 = vmatpush1.bf16.msra.mxu0 0
    %663 = vmatprep.subr.bf16.mxu0 0
    %664 = vmatpush1.bf16.msra.mxu0 0
    %665 = vmatprep.subr.bf16.mxu0 0
    %666 = vmatpush1.bf16.msra.mxu0 0
    %667 = vmatprep.subr.bf16.mxu0 0
    %668 = vmatpush1.bf16.msra.mxu0 0
    %669 = vmatprep.subr.bf16.mxu0 0
    %670 = vmatpush1.bf16.msra.mxu0 0
    %671 = vmatprep.subr.bf16.mxu0 0
    %672 = vmatpush1.bf16.msra.mxu0 0
    %673 = vmatprep.subr.bf16.mxu0 0
    %674 = vmatpush1.bf16.msra.mxu0 0
    %675 = vmatprep.subr.bf16.mxu0 0
    %676 = vmatpush1.bf16.msra.mxu0 0
    %677 = vmatprep.mubr.bf16.mxu0 0
    %678 = vmatmul.mubr.bf16.gmra.mrb[0].mxu0 %v572
    %v679 = vpop.f32.mrb[0].mxu0
    %v680 = vadd.f32 %v595, %v679
    %v681 = vpop.f32.mrb[0].mxu0
    %v682 = vpop.f32.mrb[0].mxu0
    %v683 = vadd.f32 %v595, %v682
    %v684 = vpop.f32.mrb[0].mxu0
    %685 = vmatprep.mubr.bf16.mxu0 0
    %686 = vmatmul.mubr.bf16.gmra.mrb[0].mxu0 %v573
    %v687 = vpop.f32.mrb[0].mxu0
    %v688 = vadd.f32 %v595, %v687
    %v689 = vpop.f32.mrb[0].mxu0
    %v690 = vpop.f32.mrb[0].mxu0
    %v691 = vadd.f32 %v595, %v690
    %v692 = vpop.f32.mrb[0].mxu0
    %693 = vdwg.mxu0
    %v694 = vmax.f32 %v680, 0.0
    %v695 = vmax.f32 %v683, 0.0
    %v696 = vmax.f32 %v688, 0.0
    %v697 = vmax.f32 %v691, 0.0
    %v698 = vpack.c.bf16 %v695, %v694
    %v699 = vpack.c.bf16 %v697, %v696
    %v700 = vld [vmem:[#allocation10] sm:$0xf]
    %v701 = vld [vmem:[#allocation10 + $0x4] sm:$0xf]
    %v702 = vld [vmem:[#allocation10 + $0x8] sm:$0xf]
    %v703 = vld [vmem:[#allocation10 + $0xc] sm:$0xf]
    %v704 = vld [vmem:[#allocation10 + $0x10] sm:$0xf]
    %v705 = vld [vmem:[#allocation10 + $0x14] sm:$0xf]
    %v706 = vld [vmem:[#allocation10 + $0x18] sm:$0xf]
    %v707 = vld [vmem:[#allocation10 + $0x1c] sm:$0xf]
    %v708 = vld [vmem:[#allocation10 + $0x20] sm:$0xf]
    %v709 = vld [vmem:[#allocation10 + $0x24] sm:$0xf]
    %v710 = vld [vmem:[#allocation10 + $0x28] sm:$0xf]
    %v711 = vld [vmem:[#allocation10 + $0x2c] sm:$0xf]
    %v712 = vld [vmem:[#allocation10 + $0x30] sm:$0xf]
    %v713 = vld [vmem:[#allocation10 + $0x34] sm:$0xf]
    %v714 = vld [vmem:[#allocation10 + $0x38] sm:$0xf]
    %v715 = vld [vmem:[#allocation10 + $0x3c] sm:$0xf]
    %v716 = vld [vmem:[%s10] sm:$0x1]
    %v718 = vlaneseq
    %v719 = vshrl.u32 %v718, 7
    %v720 = vsub.s32 0, %v719
    %v721 = vrot.slane %v716, %v720
    %v739 = vunpack.c.l.b16 %v700
    %v740 = vunpack.c.l.b16 %v701
    %v741 = vunpack.c.l.b16 %v702
    %v742 = vunpack.c.l.b16 %v703
    %v743 = vunpack.c.l.b16 %v704
    %v744 = vunpack.c.l.b16 %v705
    %v745 = vunpack.c.l.b16 %v706
    %v746 = vunpack.c.l.b16 %v707
    %v747 = vunpack.c.l.b16 %v708
    %v748 = vunpack.c.l.b16 %v709
    %v749 = vunpack.c.l.b16 %v710
    %v750 = vunpack.c.l.b16 %v711
    %v751 = vunpack.c.l.b16 %v712
    %v752 = vunpack.c.l.b16 %v713
    %v753 = vunpack.c.l.b16 %v714
    %v754 = vunpack.c.l.b16 %v715
    %v755 = vpack.c.b16 %v740, %v739
    %v756 = vpack.c.b16 %v742, %v741
    %v757 = vpack.c.b16 %v744, %v743
    %v758 = vpack.c.b16 %v746, %v745
    %v759 = vpack.c.b16 %v748, %v747
    %v760 = vpack.c.b16 %v750, %v749
    %v761 = vpack.c.b16 %v752, %v751
    %v762 = vpack.c.b16 %v754, %v753
    %771 = vmatprep.subr.bf16.mxu0 0
    %772 = vmatpush1.bf16.msra.mxu0 %v755
    %773 = vmatprep.subr.bf16.mxu0 0
    %774 = vmatpush1.bf16.msra.mxu0 %v756
    %775 = vmatprep.subr.bf16.mxu0 0
    %776 = vmatpush1.bf16.msra.mxu0 %v757
    %777 = vmatprep.subr.bf16.mxu0 0
    %778 = vmatpush1.bf16.msra.mxu0 %v758
    %779 = vmatprep.subr.bf16.mxu0 0
    %780 = vmatpush1.bf16.msra.mxu0 %v759
    %781 = vmatprep.subr.bf16.mxu0 0
    %782 = vmatpush1.bf16.msra.mxu0 %v760
    %783 = vmatprep.subr.bf16.mxu0 0
    %784 = vmatpush1.bf16.msra.mxu0 %v761
    %785 = vmatprep.subr.bf16.mxu0 0
    %786 = vmatpush1.bf16.msra.mxu0 %v762
    %787 = vmatprep.subr.bf16.mxu0 0
    %788 = vmatpush1.bf16.msra.mxu0 0
    %789 = vmatprep.subr.bf16.mxu0 0
    %790 = vmatpush1.bf16.msra.mxu0 0
    %791 = vmatprep.subr.bf16.mxu0 0
    %792 = vmatpush1.bf16.msra.mxu0 0
    %793 = vmatprep.subr.bf16.mxu0 0
    %794 = vmatpush1.bf16.msra.mxu0 0
    %795 = vmatprep.subr.bf16.mxu0 0
    %796 = vmatpush1.bf16.msra.mxu0 0
    %797 = vmatprep.subr.bf16.mxu0 0
    %798 = vmatpush1.bf16.msra.mxu0 0
    %799 = vmatprep.subr.bf16.mxu0 0
    %800 = vmatpush1.bf16.msra.mxu0 0
    %801 = vmatprep.subr.bf16.mxu0 0
    %802 = vmatpush1.bf16.msra.mxu0 0
    %803 = vmatprep.mubr.bf16.mxu0 0
    %804 = vmatmul.mubr.bf16.gmra.mrb[0].mxu0 %v698
    %v805 = vpop.f32.mrb[0].mxu0
    %v806 = vadd.f32 %v721, %v805
    %v807 = vpop.f32.mrb[0].mxu0
    %v808 = vpop.f32.mrb[0].mxu0
    %v809 = vadd.f32 %v721, %v808
    %v810 = vpop.f32.mrb[0].mxu0
    %811 = vmatprep.mubr.bf16.mxu0 0
    %812 = vmatmul.mubr.bf16.gmra.mrb[0].mxu0 %v699
    %v813 = vpop.f32.mrb[0].mxu0
    %v814 = vadd.f32 %v721, %v813
    %v815 = vpop.f32.mrb[0].mxu0
    %v816 = vpop.f32.mrb[0].mxu0
    %v817 = vadd.f32 %v721, %v816
    %v818 = vpop.f32.mrb[0].mxu0
    %819 = vdwg.mxu0
    %v820 = vmax.f32 %v806, 0.0
    %v821 = vmax.f32 %v809, 0.0
    %v822 = vmax.f32 %v814, 0.0
    %v823 = vmax.f32 %v817, 0.0
    %v824 = vadd.f32 %v820, %v821
    %v825 = vrot.slane %v824, 4
    %v826 = vadd.f32 %v824, %v825
    %v827 = vrot.slane %v826, 2
    %v828 = vadd.f32 %v826, %v827
    %v829 = vrot.slane %v828, 1
    %v830 = vadd.f32 %v828, %v829
    %v831 = vadd.f32 %v822, %v823
    %v832 = vrot.slane %v831, 4
    %v833 = vadd.f32 %v831, %v832
    %v834 = vrot.slane %v833, 2
    %v835 = vadd.f32 %v833, %v834
    %v836 = vrot.slane %v835, 1
    %v837 = vadd.f32 %v835, %v836
    %838 = vst [vmem:[#allocation16] sm:$0x1] %v830
    %839 = vst [vmem:[#allocation16 + $0x1] sm:$0x1] %v837
    %s840 = sld [smem:[#allocation6 + $0x2]]
    %s841 = sadd.f32 %s840, 1.0
    %v842 = vpack.c.bf16 %v821, %v820
    %v843 = vpack.c.bf16 %v823, %v822
    %v844 = vstv %s841
    %v845 = vmul.f32 %v844, %v820
    %v846 = vmul.f32 %v844, %v821
    %v847 = vmul.f32 %v844, %v822
    %v848 = vmul.f32 %v844, %v823
    %849 = vmatprep.subr.bf16.mxu0 0
    %850 = vmatpush1.bf16.msra.mxu0 %v842
    %851 = vmatprep.subr.bf16.mxu0 0
    %852 = vmatpush1.bf16.msra.mxu0 0
    %853 = vmatprep.subr.bf16.mxu0 0
    %854 = vmatpush1.bf16.msra.mxu0 0
    %855 = vmatprep.subr.bf16.mxu0 0
    %856 = vmatpush1.bf16.msra.mxu0 0
    %857 = vmatprep.subr.bf16.mxu0 0
    %858 = vmatpush1.bf16.msra.mxu0 0
    %859 = vmatprep.subr.bf16.mxu0 0
    %860 = vmatpush1.bf16.msra.mxu0 0
    %861 = vmatprep.subr.bf16.mxu0 0
    %862 = vmatpush1.bf16.msra.mxu0 0
    %863 = vmatprep.subr.bf16.mxu0 0
    %864 = vmatpush1.bf16.msra.mxu0 0
    %865 = vmatprep.subr.bf16.mxu0 0
    %866 = vmatpush1.bf16.msra.mxu0 0
    %867 = vmatprep.subr.bf16.mxu0 0
    %868 = vmatpush1.bf16.msra.mxu0 0
    %869 = vmatprep.subr.bf16.mxu0 0
    %870 = vmatpush1.bf16.msra.mxu0 0
    %871 = vmatprep.subr.bf16.mxu0 0
    %872 = vmatpush1.bf16.msra.mxu0 0
    %873 = vmatprep.subr.bf16.mxu0 0
    %874 = vmatpush1.bf16.msra.mxu0 0
    %875 = vmatprep.subr.bf16.mxu0 0
    %876 = vmatpush1.bf16.msra.mxu0 0
    %877 = vmatprep.subr.bf16.mxu0 0
    %878 = vmatpush1.bf16.msra.mxu0 0
    %879 = vmatprep.subr.bf16.mxu0 0
    %880 = vmatpush1.bf16.msra.mxu0 0
    %881 = vmatprep.mubr.bf16.mxu0 0
    %882 = vmatmul.mubr.bf16.gmra.mrb[0].mxu0 %v173
    %v883 = vpop.f32.mrb[0].mxu0
    %v884 = vadd.f32 %v845, %v883
    %v885 = vpop.f32.mrb[0].mxu0
    %v886 = vpop.f32.mrb[0].mxu0
    %v887 = vadd.f32 %v846, %v886
    %v888 = vpop.f32.mrb[0].mxu0
    %889 = vdwg.mxu0
    %890 = vmatprep.subr.bf16.mxu0 0
    %891 = vmatpush1.bf16.msra.mxu0 %v843
    %892 = vmatprep.subr.bf16.mxu0 0
    %893 = vmatpush1.bf16.msra.mxu0 0
    %894 = vmatprep.subr.bf16.mxu0 0
    %895 = vmatpush1.bf16.msra.mxu0 0
    %896 = vmatprep.subr.bf16.mxu0 0
    %897 = vmatpush1.bf16.msra.mxu0 0
    %898 = vmatprep.subr.bf16.mxu0 0
    %899 = vmatpush1.bf16.msra.mxu0 0
    %900 = vmatprep.subr.bf16.mxu0 0
    %901 = vmatpush1.bf16.msra.mxu0 0
    %902 = vmatprep.subr.bf16.mxu0 0
    %903 = vmatpush1.bf16.msra.mxu0 0
    %904 = vmatprep.subr.bf16.mxu0 0
    %905 = vmatpush1.bf16.msra.mxu0 0
    %906 = vmatprep.subr.bf16.mxu0 0
    %907 = vmatpush1.bf16.msra.mxu0 0
    %908 = vmatprep.subr.bf16.mxu0 0
    %909 = vmatpush1.bf16.msra.mxu0 0
    %910 = vmatprep.subr.bf16.mxu0 0
    %911 = vmatpush1.bf16.msra.mxu0 0
    %912 = vmatprep.subr.bf16.mxu0 0
    %913 = vmatpush1.bf16.msra.mxu0 0
    %914 = vmatprep.subr.bf16.mxu0 0
    %915 = vmatpush1.bf16.msra.mxu0 0
    %916 = vmatprep.subr.bf16.mxu0 0
    %917 = vmatpush1.bf16.msra.mxu0 0
    %918 = vmatprep.subr.bf16.mxu0 0
    %919 = vmatpush1.bf16.msra.mxu0 0
    %920 = vmatprep.subr.bf16.mxu0 0
    %921 = vmatpush1.bf16.msra.mxu0 0
    %922 = vmatprep.mubr.bf16.mxu0 0
    %923 = vmatmul.mubr.bf16.gmra.mrb[0].mxu0 %v222
    %v924 = vpop.f32.mrb[0].mxu0
    %v925 = vadd.f32 %v847, %v924
    %v926 = vpop.f32.mrb[0].mxu0
    %v927 = vpop.f32.mrb[0].mxu0
    %v928 = vadd.f32 %v848, %v927
    %v929 = vpop.f32.mrb[0].mxu0
    %930 = vdwg.mxu0
    %v931 = vpack.c.bf16 %v887, %v884
    %v932 = vpack.c.bf16 %v928, %v925
    %v933 = vld [vmem:[#allocation12] sm:$0xf]
    %v934 = vld [vmem:[#allocation12 + $0x4] sm:$0xf]
    %v935 = vld [vmem:[#allocation12 + $0x8] sm:$0xf]
    %v936 = vld [vmem:[#allocation12 + $0xc] sm:$0xf]
    %v937 = vld [vmem:[#allocation12 + $0x10] sm:$0xf]
    %v938 = vld [vmem:[#allocation12 + $0x14] sm:$0xf]
    %v939 = vld [vmem:[#allocation12 + $0x18] sm:$0xf]
    %v940 = vld [vmem:[#allocation12 + $0x1c] sm:$0xf]
    %v941 = vld [vmem:[#allocation12 + $0x20] sm:$0xf]
    %v942 = vld [vmem:[#allocation12 + $0x24] sm:$0xf]
    %v943 = vld [vmem:[#allocation12 + $0x28] sm:$0xf]
    %v944 = vld [vmem:[#allocation12 + $0x2c] sm:$0xf]
    %v945 = vld [vmem:[#allocation12 + $0x30] sm:$0xf]
    %v946 = vld [vmem:[#allocation12 + $0x34] sm:$0xf]
    %v947 = vld [vmem:[#allocation12 + $0x38] sm:$0xf]
    %v948 = vld [vmem:[#allocation12 + $0x3c] sm:$0xf]
    %v949 = vld [vmem:[%s12] sm:$0x1]
    %v951 = vlaneseq
    %v952 = vshrl.u32 %v951, 7
    %v953 = vsub.s32 0, %v952
    %v954 = vrot.slane %v949, %v953
    %v972 = vunpack.c.l.b16 %v933
    %v973 = vunpack.c.l.b16 %v934
    %v974 = vunpack.c.l.b16 %v935
    %v975 = vunpack.c.l.b16 %v936
    %v976 = vunpack.c.l.b16 %v937
    %v977 = vunpack.c.l.b16 %v938
    %v978 = vunpack.c.l.b16 %v939
    %v979 = vunpack.c.l.b16 %v940
    %v980 = vunpack.c.l.b16 %v941
    %v981 = vunpack.c.l.b16 %v942
    %v982 = vunpack.c.l.b16 %v943
    %v983 = vunpack.c.l.b16 %v944
    %v984 = vunpack.c.l.b16 %v945
    %v985 = vunpack.c.l.b16 %v946
    %v986 = vunpack.c.l.b16 %v947
    %v987 = vunpack.c.l.b16 %v948
    %v988 = vpack.c.b16 %v973, %v972
    %v989 = vpack.c.b16 %v975, %v974
    %v990 = vpack.c.b16 %v977, %v976
    %v991 = vpack.c.b16 %v979, %v978
    %v992 = vpack.c.b16 %v981, %v980
    %v993 = vpack.c.b16 %v983, %v982
    %v994 = vpack.c.b16 %v985, %v984
    %v995 = vpack.c.b16 %v987, %v986
    %1004 = vmatprep.subr.bf16.mxu0 0
    %1005 = vmatpush1.bf16.msra.mxu0 %v988
    %1006 = vmatprep.subr.bf16.mxu0 0
    %1007 = vmatpush1.bf16.msra.mxu0 %v989
    %1008 = vmatprep.subr.bf16.mxu0 0
    %1009 = vmatpush1.bf16.msra.mxu0 %v990
    %1010 = vmatprep.subr.bf16.mxu0 0
    %1011 = vmatpush1.bf16.msra.mxu0 %v991
    %1012 = vmatprep.subr.bf16.mxu0 0
    %1013 = vmatpush1.bf16.msra.mxu0 %v992
    %1014 = vmatprep.subr.bf16.mxu0 0
    %1015 = vmatpush1.bf16.msra.mxu0 %v993
    %1016 = vmatprep.subr.bf16.mxu0 0
    %1017 = vmatpush1.bf16.msra.mxu0 %v994
    %1018 = vmatprep.subr.bf16.mxu0 0
    %1019 = vmatpush1.bf16.msra.mxu0 %v995
    %1020 = vmatprep.subr.bf16.mxu0 0
    %1021 = vmatpush1.bf16.msra.mxu0 0
    %1022 = vmatprep.subr.bf16.mxu0 0
    %1023 = vmatpush1.bf16.msra.mxu0 0
    %1024 = vmatprep.subr.bf16.mxu0 0
    %1025 = vmatpush1.bf16.msra.mxu0 0
    %1026 = vmatprep.subr.bf16.mxu0 0
    %1027 = vmatpush1.bf16.msra.mxu0 0
    %1028 = vmatprep.subr.bf16.mxu0 0
    %1029 = vmatpush1.bf16.msra.mxu0 0
    %1030 = vmatprep.subr.bf16.mxu0 0
    %1031 = vmatpush1.bf16.msra.mxu0 0
    %1032 = vmatprep.subr.bf16.mxu0 0
    %1033 = vmatpush1.bf16.msra.mxu0 0
    %1034 = vmatprep.subr.bf16.mxu0 0
    %1035 = vmatpush1.bf16.msra.mxu0 0
    %1036 = vmatprep.mubr.bf16.mxu0 0
    %1037 = vmatmul.mubr.bf16.gmra.mrb[0].mxu0 %v931
    %v1038 = vpop.f32.mrb[0].mxu0
    %v1039 = vadd.f32 %v954, %v1038
    %v1040 = vpop.f32.mrb[0].mxu0
    %v1041 = vpop.f32.mrb[0].mxu0
    %v1042 = vadd.f32 %v954, %v1041
    %v1043 = vpop.f32.mrb[0].mxu0
    %1044 = vmatprep.mubr.bf16.mxu0 0
    %1045 = vmatmul.mubr.bf16.gmra.mrb[0].mxu0 %v932
    %v1046 = vpop.f32.mrb[0].mxu0
    %v1047 = vadd.f32 %v954, %v1046
    %v1048 = vpop.f32.mrb[0].mxu0
    %v1049 = vpop.f32.mrb[0].mxu0
    %v1050 = vadd.f32 %v954, %v1049
    %v1051 = vpop.f32.mrb[0].mxu0
    %1052 = vdwg.mxu0
    %v1053 = vmax.f32 %v1039, 0.0
    %v1054 = vmax.f32 %v1042, 0.0
    %v1055 = vmax.f32 %v1047, 0.0
    %v1056 = vmax.f32 %v1050, 0.0
    %v1057 = vpack.c.bf16 %v1054, %v1053
    %v1058 = vpack.c.bf16 %v1056, %v1055
    %v1059 = vld [vmem:[#allocation13] sm:$0xf]
    %v1060 = vld [vmem:[#allocation13 + $0x4] sm:$0xf]
    %v1061 = vld [vmem:[#allocation13 + $0x8] sm:$0xf]
    %v1062 = vld [vmem:[#allocation13 + $0xc] sm:$0xf]
    %v1063 = vld [vmem:[#allocation13 + $0x10] sm:$0xf]
    %v1064 = vld [vmem:[#allocation13 + $0x14] sm:$0xf]
    %v1065 = vld [vmem:[#allocation13 + $0x18] sm:$0xf]
    %v1066 = vld [vmem:[#allocation13 + $0x1c] sm:$0xf]
    %v1067 = vld [vmem:[#allocation13 + $0x20] sm:$0xf]
    %v1068 = vld [vmem:[#allocation13 + $0x24] sm:$0xf]
    %v1069 = vld [vmem:[#allocation13 + $0x28] sm:$0xf]
    %v1070 = vld [vmem:[#allocation13 + $0x2c] sm:$0xf]
    %v1071 = vld [vmem:[#allocation13 + $0x30] sm:$0xf]
    %v1072 = vld [vmem:[#allocation13 + $0x34] sm:$0xf]
    %v1073 = vld [vmem:[#allocation13 + $0x38] sm:$0xf]
    %v1074 = vld [vmem:[#allocation13 + $0x3c] sm:$0xf]
    %v1075 = vld [vmem:[%s14] sm:$0x1]
    %v1077 = vlaneseq
    %v1078 = vshrl.u32 %v1077, 7
    %v1079 = vsub.s32 0, %v1078
    %v1080 = vrot.slane %v1075, %v1079
    %v1098 = vunpack.c.l.b16 %v1059
    %v1099 = vunpack.c.l.b16 %v1060
    %v1100 = vunpack.c.l.b16 %v1061
    %v1101 = vunpack.c.l.b16 %v1062
    %v1102 = vunpack.c.l.b16 %v1063
    %v1103 = vunpack.c.l.b16 %v1064
    %v1104 = vunpack.c.l.b16 %v1065
    %v1105 = vunpack.c.l.b16 %v1066
    %v1106 = vunpack.c.l.b16 %v1067
    %v1107 = vunpack.c.l.b16 %v1068
    %v1108 = vunpack.c.l.b16 %v1069
    %v1109 = vunpack.c.l.b16 %v1070
    %v1110 = vunpack.c.l.b16 %v1071
    %v1111 = vunpack.c.l.b16 %v1072
    %v1112 = vunpack.c.l.b16 %v1073
    %v1113 = vunpack.c.l.b16 %v1074
    %v1114 = vpack.c.b16 %v1099, %v1098
    %v1115 = vpack.c.b16 %v1101, %v1100
    %v1116 = vpack.c.b16 %v1103, %v1102
    %v1117 = vpack.c.b16 %v1105, %v1104
    %v1118 = vpack.c.b16 %v1107, %v1106
    %v1119 = vpack.c.b16 %v1109, %v1108
    %v1120 = vpack.c.b16 %v1111, %v1110
    %v1121 = vpack.c.b16 %v1113, %v1112
    %1130 = vmatprep.subr.bf16.mxu0 0
    %1131 = vmatpush1.bf16.msra.mxu0 %v1114
    %1132 = vmatprep.subr.bf16.mxu0 0
    %1133 = vmatpush1.bf16.msra.mxu0 %v1115
    %1134 = vmatprep.subr.bf16.mxu0 0
    %1135 = vmatpush1.bf16.msra.mxu0 %v1116
    %1136 = vmatprep.subr.bf16.mxu0 0
    %1137 = vmatpush1.bf16.msra.mxu0 %v1117
    %1138 = vmatprep.subr.bf16.mxu0 0
    %1139 = vmatpush1.bf16.msra.mxu0 %v1118
    %1140 = vmatprep.subr.bf16.mxu0 0
    %1141 = vmatpush1.bf16.msra.mxu0 %v1119
    %1142 = vmatprep.subr.bf16.mxu0 0
    %1143 = vmatpush1.bf16.msra.mxu0 %v1120
    %1144 = vmatprep.subr.bf16.mxu0 0
    %1145 = vmatpush1.bf16.msra.mxu0 %v1121
    %1146 = vmatprep.subr.bf16.mxu0 0
    %1147 = vmatpush1.bf16.msra.mxu0 0
    %1148 = vmatprep.subr.bf16.mxu0 0
    %1149 = vmatpush1.bf16.msra.mxu0 0
    %1150 = vmatprep.subr.bf16.mxu0 0
    %1151 = vmatpush1.bf16.msra.mxu0 0
    %1152 = vmatprep.subr.bf16.mxu0 0
    %1153 = vmatpush1.bf16.msra.mxu0 0
    %1154 = vmatprep.subr.bf16.mxu0 0
    %1155 = vmatpush1.bf16.msra.mxu0 0
    %1156 = vmatprep.subr.bf16.mxu0 0
    %1157 = vmatpush1.bf16.msra.mxu0 0
    %1158 = vmatprep.subr.bf16.mxu0 0
    %1159 = vmatpush1.bf16.msra.mxu0 0
    %1160 = vmatprep.subr.bf16.mxu0 0
    %1161 = vmatpush1.bf16.msra.mxu0 0
    %1162 = vmatprep.mubr.bf16.mxu0 0
    %1163 = vmatmul.mubr.bf16.gmra.mrb[0].mxu0 %v1057
    %v1164 = vpop.f32.mrb[0].mxu0
    %v1165 = vadd.f32 %v1080, %v1164
    %v1166 = vpop.f32.mrb[0].mxu0
    %v1167 = vpop.f32.mrb[0].mxu0
    %v1168 = vadd.f32 %v1080, %v1167
    %v1169 = vpop.f32.mrb[0].mxu0
    %1170 = vmatprep.mubr.bf16.mxu0 0
    %1171 = vmatmul.mubr.bf16.gmra.mrb[0].mxu0 %v1058
    %v1172 = vpop.f32.mrb[0].mxu0
    %v1173 = vadd.f32 %v1080, %v1172
    %v1174 = vpop.f32.mrb[0].mxu0
    %v1175 = vpop.f32.mrb[0].mxu0
    %v1176 = vadd.f32 %v1080, %v1175
    %v1177 = vpop.f32.mrb[0].mxu0
    %1178 = vdwg.mxu0
    %v1179 = vmax.f32 %v1165, 0.0
    %v1180 = vmax.f32 %v1168, 0.0
    %v1181 = vmax.f32 %v1173, 0.0
    %v1182 = vmax.f32 %v1176, 0.0
    %v1183 = vadd.f32 %v1179, %v1180
    %v1184 = vrot.slane %v1183, 4
    %v1185 = vadd.f32 %v1183, %v1184
    %v1186 = vrot.slane %v1185, 2
    %v1187 = vadd.f32 %v1185, %v1186
    %v1188 = vrot.slane %v1187, 1
    %v1189 = vadd.f32 %v1187, %v1188
    %v1190 = vadd.f32 %v1181, %v1182
    %v1191 = vrot.slane %v1190, 4
    %v1192 = vadd.f32 %v1190, %v1191
    %v1193 = vrot.slane %v1192, 2
    %v1194 = vadd.f32 %v1192, %v1193
    %v1195 = vrot.slane %v1194, 1
    %v1196 = vadd.f32 %v1194, %v1195
    %1197 = vst [vmem:[#allocation18] sm:$0x1] %v1189
    %1198 = vst [vmem:[#allocation18 + $0x1] sm:$0x1] %v1196
    // Predicated region
    $region90: #{tpu_custom_call.1} parent=1 // pred_check
      _
    $region91: #{tpu_custom_call.1} parent=1 // pred_check_branch
      %1200 = sbr.rel (0) target = $region93
    $region92: #{tpu_custom_call.1} parent=1 // pred_region
      %s1202 = ssub.s32 32, 32
      %1203 = vsyncadd [#allocation4], %s1202
      %s1204 = sshll.u32 [#allocation15], 4
      %s1205 = int_to_ptr.vmem [resolvable:$true] %s1204
      %1210 = dma.vmem_to_hbm [thread:$0]  %s1205, 32, %s15, [#allocation4], 16, 16, 1
    $region93: #{tpu_custom_call.1} parent=1 // pred_fallthru
      _
    // Predicated region
    $region94: #{tpu_custom_call.1} parent=1 // pred_check
      _
    $region95: #{tpu_custom_call.1} parent=1 // pred_check_branch
      %1212 = sbr.rel (0) target = $region97
    $region96: #{tpu_custom_call.1} parent=1 // pred_region
      %s1214 = ssub.s32 32, 32
      %1215 = vsyncadd [#allocation17], %s1214
      %s1216 = sshll.u32 [#allocation16], 4
      %s1217 = int_to_ptr.vmem [resolvable:$true] %s1216
      %1222 = dma.vmem_to_hbm [thread:$0]  %s1217, 32, %s16, [#allocation17], 16, 16, 1
    $region97: #{tpu_custom_call.1} parent=1 // pred_fallthru
      _
    // Predicated region
    $region98: #{tpu_custom_call.1} parent=1 // pred_check
      _
    $region99: #{tpu_custom_call.1} parent=1 // pred_check_branch
      %1224 = sbr.rel (0) target = $region101
    $region100: #{tpu_custom_call.1} parent=1 // pred_region
      %s1226 = ssub.s32 32, 32
      %1227 = vsyncadd [#allocation17], %s1226
      %s1228 = sshll.u32 [#allocation18], 4
      %s1229 = int_to_ptr.vmem [resolvable:$true] %s1228
      %1234 = dma.vmem_to_hbm [thread:$0]  %s1229, 32, %s17, [#allocation17], 16, 16, 1
    $region101: #{tpu_custom_call.1} parent=1 // pred_fallthru
      _
    // Predicated region
    $region102: #{tpu_custom_call.1} parent=1 // pred_check
      _
    $region103: #{tpu_custom_call.1} parent=1 // pred_check_branch
      %1236 = sbr.rel (0) target = $region105
    $region104: #{tpu_custom_call.1} parent=1 // pred_region
      %1237 = dma.done [#allocation4], 32
    $region105: #{tpu_custom_call.1} parent=1 // pred_fallthru
      _
    // Predicated region
    $region106: #{tpu_custom_call.1} parent=1 // pred_check
      _
    $region107: #{tpu_custom_call.1} parent=1 // pred_check_branch
      %1239 = sbr.rel (0) target = $region109
    $region108: #{tpu_custom_call.1} parent=1 // pred_region
      %1240 = dma.done [#allocation17], 32
    $region109: #{tpu_custom_call.1} parent=1 // pred_fallthru
      _
    // Predicated region
    $region110: #{tpu_custom_call.1} parent=1 // pred_check
      _
    $region111: #{tpu_custom_call.1} parent=1 // pred_check_branch
      %1242 = sbr.rel (0) target = $region113
    $region112: #{tpu_custom_call.1} parent=1 // pred_region
      %1243 = dma.done [#allocation17], 32
    $region113: #{tpu_custom_call.1} parent=1 // pred_fallthru
      _
    %1244 = vsyncpa [#allocation3], 1
    %1245 = vsyncpa [#allocation8], 1
    %1246 = vsyncpa [#allocation11], 1
    %1247 = vsyncpa [#allocation14], 1
    %1248 = vsyncpa [#allocation4], 1
    %1249 = vsyncpa [#allocation17], 1
    %1250 = vsyncpa [#allocation5], 1

</llo_original>
